<compile_context>
chip_gen: v6e
topology: v6e:2x2x1
jax: 0.10.0
libtpu: 0.0.40
codegen_flags: <defaults>
</compile_context>

<pallas_src>
import functools
import math

import jax
import jax.numpy as jnp
from jax.experimental import pallas as pl
from jax.experimental.pallas import tpu as pltpu

EPS = 1e-6


# ------------------------- in-kernel helpers -------------------------------


def _layernorm(x, gamma, beta):
    # Annotated-transformer LayerNorm: unbiased std (ddof=1), eps added to std.
    mean = jnp.mean(x, axis=-1, keepdims=True)
    var = jnp.sum((x - mean) ** 2, axis=-1, keepdims=True) / (x.shape[-1] - 1)
    std = jnp.sqrt(var)
    return gamma * (x - mean) / (std + EPS) + beta


# ------------------------------ fused kernel ---------------------------------


def fused_block_kernel(x_ref, wqkv_ref, wo_ref, w1_ref, w2_ref, vecs_ref,
                       fina_ref, finb_ref, o_ref, *,
                       num_heads, bpb, seq_len, d_model, d_ff, compute_dtype):
    """One encoder layer on a (bpb*S, D) row slab; layers stream on grid axis 1."""
    l = pl.program_id(1)

    # Initialize the VMEM-resident f32 carry from the input on the first layer.
    @pl.when(l == 0)
    def _():
        o_ref[...] = x_ref[...]

    rows = bpb * seq_len
    dk = d_model // num_heads

    # Packed per-layer vectors: one (8, Vw) f32 block.
    vecs = vecs_ref[0]
    ln1_a = vecs[0:1, :d_model]
    ln1_b = vecs[1:2, :d_model]
    b_qkv = vecs[2:3, :3 * d_model]
    bo    = vecs[3:4, :d_model]
    ln2_a = vecs[4:5, :d_model]
    ln2_b = vecs[5:6, :d_model]
    b1    = vecs[6:7, :d_ff]
    b2    = vecs[7:8, :d_model]

    x = o_ref[...]                                      # (rows, D) f32 residual carry

    # ------------- self-attention sublayer: x + Wo(MHSA(LN(x))) -------------
    xn = _layernorm(x, ln1_a, ln1_b)
    qkv = jnp.dot(xn.astype(compute_dtype), wqkv_ref[0],
                  preferred_element_type=jnp.float32) + b_qkv
    q = qkv[:, :d_model]                                # 1/sqrt(dk) folded into wq
    k = qkv[:, d_model:2 * d_model]
    v = qkv[:, 2 * d_model:]

    q3 = q.reshape(bpb, seq_len, d_model).astype(compute_dtype)
    k3 = k.reshape(bpb, seq_len, d_model).astype(compute_dtype)
    v3 = v.reshape(bpb, seq_len, d_model).astype(compute_dtype)

    heads = []
    for h in range(num_heads):                          # static unroll over heads
        sl = slice(h * dk, (h + 1) * dk)
        s = jnp.einsum("bqd,bkd->bqk", q3[..., sl], k3[..., sl],
                       preferred_element_type=jnp.float32)
        m = jnp.max(s, axis=-1, keepdims=True)
        p = jnp.exp(s - m)
        inv = 1.0 / jnp.sum(p, axis=-1, keepdims=True)  # divide only the (b,S,1) sums
        p = (p * inv).astype(compute_dtype)
        heads.append(jnp.einsum("bqk,bkd->bqd", p, v3[..., sl],
                                preferred_element_type=jnp.float32))
    concat = jnp.concatenate(heads, axis=-1).reshape(rows, d_model)
    x = x + jnp.dot(concat.astype(compute_dtype), wo_ref[0],
                    preferred_element_type=jnp.float32) + bo

    # ------------- feed-forward sublayer: x + W2(relu(W1(LN(x)))) -------------
    xn = _layernorm(x, ln2_a, ln2_b)
    hid = jnp.dot(xn.astype(compute_dtype), w1_ref[0],
                  preferred_element_type=jnp.float32) + b1
    hid = jnp.maximum(hid, 0.0)
    x = x + jnp.dot(hid.astype(compute_dtype), w2_ref[0],
                    preferred_element_type=jnp.float32) + b2

    o_ref[...] = x

    # Final LayerNorm fused into the last layer step.
    @pl.when(l == pl.num_programs(1) - 1)
    def _():
        o_ref[...] = _layernorm(o_ref[...], fina_ref[...], finb_ref[...])


# ------------------------------ wrappers -------------------------------------


def _pick_batches_per_block(B, S, target_rows=1024, min_row_blocks=2):
    """Divisor of B giving a tile-friendly row slab; prefer >=2 row blocks (v7x)."""
    cands = [d for d in range(1, B + 1)
             if B % d == 0 and ((d * S) % 8 == 0 or d == B)]

    def pick(pool):
        fit = [d for d in pool if d * S <= target_rows]
        return max(fit) if fit else min(pool)

    multi = [d for d in cands if B // d >= min_row_blocks]
    return pick(multi) if multi else pick(cands)


def prep_params(params, num_heads, compute_dtype=jnp.bfloat16):
    """One-time host-side prep: stack per-layer params on a leading N axis,
    fuse Q/K/V, fold 1/sqrt(dk) into wq, cast weights to bf16, pack the small
    per-layer vectors into one (N, 8, Vw) f32 array."""
    layers = params["layers"]
    d_model = layers[0]["wq"].shape[0]
    d_ff = layers[0]["w1"].shape[1]
    dk = d_model // num_heads
    scale = 1.0 / math.sqrt(dk)
    vw = max(3 * d_model, d_ff)

    def padv(v):
        v = v.reshape(-1).astype(jnp.float32)
        return jnp.pad(v, (0, vw - v.shape[0]))

    w_qkv, wo, w1, w2, vecs = [], [], [], [], []
    for l in layers:
        w_qkv.append(jnp.concatenate([l["wq"] * scale, l["wk"], l["wv"]], axis=1))
        wo.append(l["wo"])
        w1.append(l["w1"])
        w2.append(l["w2"])
        b_qkv = jnp.concatenate([l["bq"], l["bk"], l["bv"]], axis=1)
        vecs.append(jnp.stack([padv(l["ln1_a"]), padv(l["ln1_b"]), padv(b_qkv),
                               padv(l["bo"]), padv(l["ln2_a"]), padv(l["ln2_b"]),
                               padv(l["b1"]), padv(l["b2"])], axis=0))
    return dict(
        w_qkv=jnp.stack(w_qkv).astype(compute_dtype),   # (N, D, 3D)
        wo=jnp.stack(wo).astype(compute_dtype),         # (N, D, D)
        w1=jnp.stack(w1).astype(compute_dtype),         # (N, D, DFF)
        w2=jnp.stack(w2).astype(compute_dtype),         # (N, DFF, D)
        vecs=jnp.stack(vecs),                           # (N, 8, Vw) f32
        final_a=params["final_a"].astype(jnp.float32),  # (1, D)
        final_b=params["final_b"].astype(jnp.float32),  # (1, D)
    )


@functools.partial(jax.jit, static_argnames=("num_heads",))
def attention_block_forward(x, prepped, num_heads):
    """Full AttentionBlock forward: N encoder layers + final LN, one pallas_call."""
    B, S, D = x.shape
    N = prepped["w_qkv"].shape[0]
    DFF = prepped["w1"].shape[-1]
    Vw = prepped["vecs"].shape[-1]
    compute_dtype = prepped["w_qkv"].dtype

    bpb = _pick_batches_per_block(B, S)
    R = B // bpb
    rows = bpb * S
    x_flat = x.reshape(B * S, D).astype(jnp.float32)

    x_map = lambda r, l: (r, 0)          # row slab, invariant over the layer axis
    layer_map = lambda r, l: (l, 0, 0)   # stream layer l's weights / vectors
    const_map = lambda r, l: (0, 0)      # final LN params, grid-invariant

    in_specs = [
        pl.BlockSpec((rows, D), x_map),            # x (f32)
        pl.BlockSpec((1, D, 3 * D), layer_map),    # fused w_qkv (bf16, scale folded)
        pl.BlockSpec((1, D, D), layer_map),        # wo (bf16)
        pl.BlockSpec((1, D, DFF), layer_map),      # w1 (bf16)
        pl.BlockSpec((1, DFF, D), layer_map),      # w2 (bf16)
        pl.BlockSpec((1, 8, Vw), layer_map),       # packed LN params + biases (f32)
        pl.BlockSpec((1, D), const_map),           # final_a
        pl.BlockSpec((1, D), const_map),           # final_b
    ]

    # VMEM budget: double-buffered weight blocks + in/out activation slabs
    # + qkv/hid intermediates + headroom (clamped to be safe on v7x's 64 MiB).
    w_item = jnp.dtype(compute_dtype).itemsize
    w_layer_bytes = (D * 3 * D + D * D + 2 * D * DFF) * w_item + 8 * Vw * 4
    act_bytes = rows * D * 4
    inter_bytes = rows * (3 * D + DFF) * 4
    vmem_needed = 2 * w_layer_bytes + 4 * act_bytes + 2 * inter_bytes + (4 << 20)
    vmem_limit = int(min(max(vmem_needed, 32 << 20), 64 << 20))

    flops = B * S * N * (8 * D * D + 4 * D * DFF + 4 * S * D)
    transcendentals = B * N * num_heads * S * S
    bytes_accessed = 2 * B * S * D * 4 + R * N * w_layer_bytes + 2 * D * 4

    kernel = functools.partial(
        fused_block_kernel, num_heads=num_heads, bpb=bpb, seq_len=S,
        d_model=D, d_ff=DFF, compute_dtype=compute_dtype)

    out_flat = pl.pallas_call(
        kernel,
        out_shape=jax.ShapeDtypeStruct((B * S, D), jnp.float32),
        grid=(R, N),
        in_specs=in_specs,
        out_specs=pl.BlockSpec((rows, D), x_map),
        compiler_params=pltpu.CompilerParams(
            dimension_semantics=("parallel", "arbitrary"),
            vmem_limit_bytes=vmem_limit),
        cost_estimate=pl.CostEstimate(flops=int(flops),
                                      transcendentals=int(transcendentals),
                                      bytes_accessed=int(bytes_accessed)),
    )(x_flat, prepped["w_qkv"], prepped["wo"], prepped["w1"], prepped["w2"],
      prepped["vecs"], prepped["final_a"], prepped["final_b"])
    return out_flat.reshape(B, S, D)


# --------------------------- pure-JAX reference ------------------------------
# Mirrors the kernel's precision policy (bf16 matmul operands, f32 accumulation,
# f32 residuals / LayerNorm / softmax) so the tight tolerance check is meaningful.


def _ref_ln(x, a, b):
    mean = jnp.mean(x, axis=-1, keepdims=True)
    var = jnp.sum((x - mean) ** 2, axis=-1, keepdims=True) / (x.shape[-1] - 1)
    return a * (x - mean) / (jnp.sqrt(var) + EPS) + b


def ref_forward(x, params, num_heads, compute_dtype=jnp.bfloat16):
    B, S, D = x.shape
    dk = D // num_heads
    scale = 1.0 / math.sqrt(dk)
    cast = lambda a: a.astype(compute_dtype)
    mm = lambda a, b: jnp.dot(cast(a), cast(b), preferred_element_type=jnp.float32)
    for layer in params["layers"]:
        xn = _ref_ln(x, layer["ln1_a"][0], layer["ln1_b"][0])
        q = mm(xn, layer["wq"] * scale) + layer["bq"][0]
        k = mm(xn, layer["wk"]) + layer["bk"][0]
        v = mm(xn, layer["wv"]) + layer["bv"][0]
        q = q.reshape(B, S, num_heads, dk).transpose(0, 2, 1, 3)
        k = k.reshape(B, S, num_heads, dk).transpose(0, 2, 1, 3)
        v = v.reshape(B, S, num_heads, dk).transpose(0, 2, 1, 3)
        s = jnp.einsum("bhqd,bhkd->bhqk", cast(q), cast(k),
                       preferred_element_type=jnp.float32)
        p = jnp.exp(s - jnp.max(s, axis=-1, keepdims=True))
        p = p / jnp.sum(p, axis=-1, keepdims=True)
        o = jnp.einsum("bhqk,bhkd->bhqd", cast(p), cast(v),
                       preferred_element_type=jnp.float32)
        o = o.transpose(0, 2, 1, 3).reshape(B, S, D)
        x = x + mm(o, layer["wo"]) + layer["bo"][0]
        xn = _ref_ln(x, layer["ln2_a"][0], layer["ln2_b"][0])
        h = jnp.maximum(mm(xn, layer["w1"]) + layer["b1"][0], 0.0)
        x = x + mm(h, layer["w2"]) + layer["b2"][0]
    return _ref_ln(x, params["final_a"][0], params["final_b"][0])


# ------------------------------- main ----------------------------------------


def make_params(key, num_layers, d_model, d_ff):
    layers = []
    for i in range(num_layers):
        ks = jax.random.split(jax.random.fold_in(key, i), 8)
        s = 0.05
        layers.append(dict(
            ln1_a=jnp.ones((1, d_model), jnp.float32),
            ln1_b=jnp.zeros((1, d_model), jnp.float32),
            ln2_a=jnp.ones((1, d_model), jnp.float32),
            ln2_b=jnp.zeros((1, d_model), jnp.float32),
            wq=s * jax.random.normal(ks[0], (d_model, d_model), jnp.float32),
            bq=s * jax.random.normal(ks[1], (1, d_model), jnp.float32),
            wk=s * jax.random.normal(ks[2], (d_model, d_model), jnp.float32),
            bk=jnp.zeros((1, d_model), jnp.float32),
            wv=s * jax.random.normal(ks[3], (d_model, d_model), jnp.float32),
            bv=jnp.zeros((1, d_model), jnp.float32),
            wo=s * jax.random.normal(ks[4], (d_model, d_model), jnp.float32),
            bo=s * jax.random.normal(ks[5], (1, d_model), jnp.float32),
            w1=s * jax.random.normal(ks[6], (d_model, d_ff), jnp.float32),
            b1=jnp.zeros((1, d_ff), jnp.float32),
            w2=s * jax.random.normal(ks[7], (d_ff, d_model), jnp.float32),
            b2=jnp.zeros((1, d_model), jnp.float32),
        ))
    return dict(layers=layers,
                final_a=jnp.ones((1, d_model), jnp.float32),
                final_b=jnp.zeros((1, d_model), jnp.float32))


if __name__ == "__main__":
    B, S, D, H, DFF, N = 2, 8, 32, 4, 64, 2

    key = jax.random.PRNGKey(0)
    kx, kp = jax.random.split(key)
    x = jax.random.normal(kx, (B, S, D), jnp.float32)
    params = make_params(kp, N, D, DFF)

    prepped = prep_params(params, num_heads=H)          # one-time weight prep (hoisted)
    out = attention_block_forward(x, prepped, num_heads=H)
    out = jax.block_until_ready(out)

    ref = ref_forward(x, params, num_heads=H)
    err = float(jnp.max(jnp.abs(out - ref)))
    assert out.shape == (B, S, D)
    assert jnp.allclose(out, ref, atol=1e-3, rtol=1e-3), f"max abs err {err}"

    print("KERNEL_OK")
</pallas_src>

<mosaic_0001>
module attributes {stable_mosaic.version = 11 : i64} {
  func.func @fused_block_kernel(%arg0: i32, %arg1: i32, %arg2: memref<8x32xf32, #tpu.memory_space<vmem>>, %arg3: memref<1x32x96xbf16, #tpu.memory_space<vmem>>, %arg4: memref<1x32x32xbf16, #tpu.memory_space<vmem>>, %arg5: memref<1x32x64xbf16, #tpu.memory_space<vmem>>, %arg6: memref<1x64x32xbf16, #tpu.memory_space<vmem>>, %arg7: memref<1x8x96xf32, #tpu.memory_space<vmem>>, %arg8: memref<1x32xf32, #tpu.memory_space<vmem>>, %arg9: memref<1x32xf32, #tpu.memory_space<vmem>>, %arg10: memref<8x32xf32, #tpu.memory_space<vmem>>) attributes {dimension_semantics = [#tpu.dimension_semantics<parallel>, #tpu.dimension_semantics<arbitrary>], iteration_bounds = array<i64: 2, 2>, scalar_prefetch = 0 : i64, scratch_operands = 0 : i64, tpu.core_type = #tpu.core_type<tc>, window_params = [{transform_indices = @transform_0, window_bounds = array<i64: 8, 32>}, {transform_indices = @transform_1, window_bounds = array<i64: 1, 32, 96>}, {transform_indices = @transform_2, window_bounds = array<i64: 1, 32, 32>}, {transform_indices = @transform_3, window_bounds = array<i64: 1, 32, 64>}, {transform_indices = @transform_4, window_bounds = array<i64: 1, 64, 32>}, {transform_indices = @transform_5, window_bounds = array<i64: 1, 8, 96>}, {pipeline_mode = #tpu.pipeline_mode<synchronous>, transform_indices = @transform_6, window_bounds = array<i64: 1, 32>}, {pipeline_mode = #tpu.pipeline_mode<synchronous>, transform_indices = @transform_7, window_bounds = array<i64: 1, 32>}, {transform_indices = @transform_8, window_bounds = array<i64: 8, 32>}]} {
    %c0_i32 = arith.constant 0 : i32
    %0 = arith.cmpi eq, %arg1, %c0_i32 : i32
    %1 = arith.extui %0 : i1 to i32
    %c0_i32_0 = arith.constant 0 : i32
    %2 = arith.cmpi ne, %1, %c0_i32_0 : i32
    scf.if %2 {
      %c0_54 = arith.constant 0 : index
      %c0_55 = arith.constant 0 : index
      %169 = vector.load %arg2[%c0_54, %c0_55] : memref<8x32xf32, #tpu.memory_space<vmem>>, vector<8x32xf32>
      %c0_56 = arith.constant 0 : index
      %c0_57 = arith.constant 0 : index
      %170 = vector.load %arg10[%c0_56, %c0_57] : memref<8x32xf32, #tpu.memory_space<vmem>>, vector<8x32xf32>
      tpu.vector_store %arg10[%c0_56, %c0_57], %169 {strides = array<i32>} : memref<8x32xf32, #tpu.memory_space<vmem>>, vector<8x32xf32>,
    } else {
    }
    %c0 = arith.constant 0 : index
    %c0_1 = arith.constant 0 : index
    %c0_2 = arith.constant 0 : index
    %3 = vector.load %arg7[%c0, %c0_1, %c0_2] : memref<1x8x96xf32, #tpu.memory_space<vmem>>, vector<1x8x96xf32>
    %4 = vector.shape_cast %3 : vector<1x8x96xf32> to vector<8x96xf32>
    %5 = vector.extract_strided_slice %4 {offsets = [0, 0], sizes = [1, 32], strides = [1, 1]} : vector<8x96xf32> to vector<1x32xf32>
    %6 = vector.extract_strided_slice %4 {offsets = [1, 0], sizes = [1, 32], strides = [1, 1]} : vector<8x96xf32> to vector<1x32xf32>
    %7 = vector.extract_strided_slice %4 {offsets = [2, 0], sizes = [1, 96], strides = [1, 1]} : vector<8x96xf32> to vector<1x96xf32>
    %8 = vector.extract_strided_slice %4 {offsets = [3, 0], sizes = [1, 32], strides = [1, 1]} : vector<8x96xf32> to vector<1x32xf32>
    %9 = vector.extract_strided_slice %4 {offsets = [4, 0], sizes = [1, 32], strides = [1, 1]} : vector<8x96xf32> to vector<1x32xf32>
    %10 = vector.extract_strided_slice %4 {offsets = [5, 0], sizes = [1, 32], strides = [1, 1]} : vector<8x96xf32> to vector<1x32xf32>
    %11 = vector.extract_strided_slice %4 {offsets = [6, 0], sizes = [1, 64], strides = [1, 1]} : vector<8x96xf32> to vector<1x64xf32>
    %12 = vector.extract_strided_slice %4 {offsets = [7, 0], sizes = [1, 32], strides = [1, 1]} : vector<8x96xf32> to vector<1x32xf32>
    %c0_3 = arith.constant 0 : index
    %c0_4 = arith.constant 0 : index
    %13 = vector.load %arg10[%c0_3, %c0_4] : memref<8x32xf32, #tpu.memory_space<vmem>>, vector<8x32xf32>
    %cst = arith.constant dense<0.000000e+00> : vector<8xf32>
    %14 = vector.multi_reduction <add>, %13, %cst [1] : vector<8x32xf32> to vector<8xf32>
    %15 = vector.shape_cast %14 : vector<8xf32> to vector<8x1xf32>
    %cst_5 = arith.constant 3.200000e+01 : f32
    %16 = vector.broadcast %cst_5 : f32 to vector<8x1xf32>
    %17 = arith.divf %15, %16 : vector<8x1xf32>
    %18 = vector.broadcast %17 : vector<8x1xf32> to vector<8x32xf32>
    %19 = arith.subf %13, %18 : vector<8x32xf32>
    %20 = arith.mulf %19, %19 : vector<8x32xf32>
    %cst_6 = arith.constant dense<0.000000e+00> : vector<8xf32>
    %21 = vector.multi_reduction <add>, %20, %cst_6 [1] : vector<8x32xf32> to vector<8xf32>
    %22 = vector.shape_cast %21 : vector<8xf32> to vector<8x1xf32>
    %cst_7 = arith.constant 3.100000e+01 : f32
    %23 = vector.broadcast %cst_7 : f32 to vector<8x1xf32>
    %24 = arith.divf %22, %23 : vector<8x1xf32>
    %25 = math.sqrt %24 : vector<8x1xf32>
    %26 = vector.broadcast %17 : vector<8x1xf32> to vector<8x32xf32>
    %27 = arith.subf %13, %26 : vector<8x32xf32>
    %28 = vector.broadcast %5 : vector<1x32xf32> to vector<8x32xf32>
    %29 = arith.mulf %28, %27 : vector<8x32xf32>
    %cst_8 = arith.constant 9.99999997E-7 : f32
    %30 = vector.broadcast %cst_8 : f32 to vector<8x1xf32>
    %31 = arith.addf %25, %30 : vector<8x1xf32>
    %32 = vector.broadcast %31 : vector<8x1xf32> to vector<8x32xf32>
    %33 = arith.divf %29, %32 : vector<8x32xf32>
    %34 = vector.broadcast %6 : vector<1x32xf32> to vector<8x32xf32>
    %35 = arith.addf %33, %34 : vector<8x32xf32>
    %36 = arith.truncf %35 : vector<8x32xf32> to vector<8x32xbf16>
    %c0_9 = arith.constant 0 : index
    %c0_10 = arith.constant 0 : index
    %c0_11 = arith.constant 0 : index
    %37 = vector.load %arg3[%c0_9, %c0_10, %c0_11] : memref<1x32x96xbf16, #tpu.memory_space<vmem>>, vector<1x32x96xbf16>
    %38 = vector.shape_cast %37 : vector<1x32x96xbf16> to vector<32x96xbf16>
    %cst_12 = arith.constant dense<0.000000e+00> : vector<8x96xf32>
    %39 = tpu.matmul %36, %38, %cst_12 {dimension_numbers = #tpu.dot_dimension_numbers<[1], [0], [0], [1], [0, 0, 1, 1], [], []>} : vector<8x32xbf16>, vector<32x96xbf16>, vector<8x96xf32> -> vector<8x96xf32>
    %40 = vector.broadcast %7 : vector<1x96xf32> to vector<8x96xf32>
    %41 = arith.addf %39, %40 : vector<8x96xf32>
    %42 = vector.extract_strided_slice %41 {offsets = [0, 0], sizes = [8, 32], strides = [1, 1]} : vector<8x96xf32> to vector<8x32xf32>
    %43 = vector.extract_strided_slice %41 {offsets = [0, 32], sizes = [8, 32], strides = [1, 1]} : vector<8x96xf32> to vector<8x32xf32>
    %44 = vector.extract_strided_slice %41 {offsets = [0, 64], sizes = [8, 32], strides = [1, 1]} : vector<8x96xf32> to vector<8x32xf32>
    %45 = vector.shape_cast %42 : vector<8x32xf32> to vector<1x8x32xf32>
    %46 = arith.truncf %45 : vector<1x8x32xf32> to vector<1x8x32xbf16>
    %47 = vector.shape_cast %43 : vector<8x32xf32> to vector<1x8x32xf32>
    %48 = arith.truncf %47 : vector<1x8x32xf32> to vector<1x8x32xbf16>
    %49 = vector.shape_cast %44 : vector<8x32xf32> to vector<1x8x32xf32>
    %50 = arith.truncf %49 : vector<1x8x32xf32> to vector<1x8x32xbf16>
    %51 = vector.extract_strided_slice %46 {offsets = [0, 0, 0], sizes = [1, 8, 8], strides = [1, 1, 1]} : vector<1x8x32xbf16> to vector<1x8x8xbf16>
    %52 = vector.extract_strided_slice %48 {offsets = [0, 0, 0], sizes = [1, 8, 8], strides = [1, 1, 1]} : vector<1x8x32xbf16> to vector<1x8x8xbf16>
    "tpu.trace_start"() <{level = 10 : i32, message = "bqd,bkd->bqk"}> : () -> ()
    %cst_13 = arith.constant dense<0.000000e+00> : vector<1x8x8xf32>
    %53 = tpu.matmul %51, %52, %cst_13 {dimension_numbers = #tpu.dot_dimension_numbers<[2], [2], [1], [1], [0, 0, 0, 1, 1, 1], [0], [0]>} : vector<1x8x8xbf16>, vector<1x8x8xbf16>, vector<1x8x8xf32> -> vector<1x8x8xf32>
    "tpu.trace_stop"() : () -> ()
    %cst_14 = arith.constant dense<0xFF800000> : vector<1x8xf32>
    %54 = vector.multi_reduction <maximumf>, %53, %cst_14 [2] : vector<1x8x8xf32> to vector<1x8xf32>
    %55 = vector.shape_cast %54 : vector<1x8xf32> to vector<1x8x1xf32>
    %56 = vector.broadcast %55 : vector<1x8x1xf32> to vector<1x8x8xf32>
    %57 = arith.subf %53, %56 : vector<1x8x8xf32>
    %58 = math.exp %57 : vector<1x8x8xf32>
    %cst_15 = arith.constant dense<0.000000e+00> : vector<1x8xf32>
    %59 = vector.multi_reduction <add>, %58, %cst_15 [2] : vector<1x8x8xf32> to vector<1x8xf32>
    %60 = vector.shape_cast %59 : vector<1x8xf32> to vector<1x8x1xf32>
    %cst_16 = arith.constant 1.000000e+00 : f32
    %61 = vector.broadcast %cst_16 : f32 to vector<1x8x1xf32>
    %62 = arith.divf %61, %60 : vector<1x8x1xf32>
    %63 = vector.broadcast %62 : vector<1x8x1xf32> to vector<1x8x8xf32>
    %64 = arith.mulf %58, %63 : vector<1x8x8xf32>
    %65 = arith.truncf %64 : vector<1x8x8xf32> to vector<1x8x8xbf16>
    %66 = vector.extract_strided_slice %50 {offsets = [0, 0, 0], sizes = [1, 8, 8], strides = [1, 1, 1]} : vector<1x8x32xbf16> to vector<1x8x8xbf16>
    "tpu.trace_start"() <{level = 10 : i32, message = "bqk,bkd->bqd"}> : () -> ()
    %cst_17 = arith.constant dense<0.000000e+00> : vector<1x8x8xf32>
    %67 = tpu.matmul %65, %66, %cst_17 {dimension_numbers = #tpu.dot_dimension_numbers<[2], [1], [1], [2], [0, 0, 0, 1, 1, 2], [0], [0]>} : vector<1x8x8xbf16>, vector<1x8x8xbf16>, vector<1x8x8xf32> -> vector<1x8x8xf32>
    "tpu.trace_stop"() : () -> ()
    %68 = vector.extract_strided_slice %46 {offsets = [0, 0, 8], sizes = [1, 8, 8], strides = [1, 1, 1]} : vector<1x8x32xbf16> to vector<1x8x8xbf16>
    %69 = vector.extract_strided_slice %48 {offsets = [0, 0, 8], sizes = [1, 8, 8], strides = [1, 1, 1]} : vector<1x8x32xbf16> to vector<1x8x8xbf16>
    "tpu.trace_start"() <{level = 10 : i32, message = "bqd,bkd->bqk"}> : () -> ()
    %cst_18 = arith.constant dense<0.000000e+00> : vector<1x8x8xf32>
    %70 = tpu.matmul %68, %69, %cst_18 {dimension_numbers = #tpu.dot_dimension_numbers<[2], [2], [1], [1], [0, 0, 0, 1, 1, 1], [0], [0]>} : vector<1x8x8xbf16>, vector<1x8x8xbf16>, vector<1x8x8xf32> -> vector<1x8x8xf32>
    "tpu.trace_stop"() : () -> ()
    %cst_19 = arith.constant dense<0xFF800000> : vector<1x8xf32>
    %71 = vector.multi_reduction <maximumf>, %70, %cst_19 [2] : vector<1x8x8xf32> to vector<1x8xf32>
    %72 = vector.shape_cast %71 : vector<1x8xf32> to vector<1x8x1xf32>
    %73 = vector.broadcast %72 : vector<1x8x1xf32> to vector<1x8x8xf32>
    %74 = arith.subf %70, %73 : vector<1x8x8xf32>
    %75 = math.exp %74 : vector<1x8x8xf32>
    %cst_20 = arith.constant dense<0.000000e+00> : vector<1x8xf32>
    %76 = vector.multi_reduction <add>, %75, %cst_20 [2] : vector<1x8x8xf32> to vector<1x8xf32>
    %77 = vector.shape_cast %76 : vector<1x8xf32> to vector<1x8x1xf32>
    %cst_21 = arith.constant 1.000000e+00 : f32
    %78 = vector.broadcast %cst_21 : f32 to vector<1x8x1xf32>
    %79 = arith.divf %78, %77 : vector<1x8x1xf32>
    %80 = vector.broadcast %79 : vector<1x8x1xf32> to vector<1x8x8xf32>
    %81 = arith.mulf %75, %80 : vector<1x8x8xf32>
    %82 = arith.truncf %81 : vector<1x8x8xf32> to vector<1x8x8xbf16>
    %83 = vector.extract_strided_slice %50 {offsets = [0, 0, 8], sizes = [1, 8, 8], strides = [1, 1, 1]} : vector<1x8x32xbf16> to vector<1x8x8xbf16>
    "tpu.trace_start"() <{level = 10 : i32, message = "bqk,bkd->bqd"}> : () -> ()
    %cst_22 = arith.constant dense<0.000000e+00> : vector<1x8x8xf32>
    %84 = tpu.matmul %82, %83, %cst_22 {dimension_numbers = #tpu.dot_dimension_numbers<[2], [1], [1], [2], [0, 0, 0, 1, 1, 2], [0], [0]>} : vector<1x8x8xbf16>, vector<1x8x8xbf16>, vector<1x8x8xf32> -> vector<1x8x8xf32>
    "tpu.trace_stop"() : () -> ()
    %85 = vector.extract_strided_slice %46 {offsets = [0, 0, 16], sizes = [1, 8, 8], strides = [1, 1, 1]} : vector<1x8x32xbf16> to vector<1x8x8xbf16>
    %86 = vector.extract_strided_slice %48 {offsets = [0, 0, 16], sizes = [1, 8, 8], strides = [1, 1, 1]} : vector<1x8x32xbf16> to vector<1x8x8xbf16>
    "tpu.trace_start"() <{level = 10 : i32, message = "bqd,bkd->bqk"}> : () -> ()
    %cst_23 = arith.constant dense<0.000000e+00> : vector<1x8x8xf32>
    %87 = tpu.matmul %85, %86, %cst_23 {dimension_numbers = #tpu.dot_dimension_numbers<[2], [2], [1], [1], [0, 0, 0, 1, 1, 1], [0], [0]>} : vector<1x8x8xbf16>, vector<1x8x8xbf16>, vector<1x8x8xf32> -> vector<1x8x8xf32>
    "tpu.trace_stop"() : () -> ()
    %cst_24 = arith.constant dense<0xFF800000> : vector<1x8xf32>
    %88 = vector.multi_reduction <maximumf>, %87, %cst_24 [2] : vector<1x8x8xf32> to vector<1x8xf32>
    %89 = vector.shape_cast %88 : vector<1x8xf32> to vector<1x8x1xf32>
    %90 = vector.broadcast %89 : vector<1x8x1xf32> to vector<1x8x8xf32>
    %91 = arith.subf %87, %90 : vector<1x8x8xf32>
    %92 = math.exp %91 : vector<1x8x8xf32>
    %cst_25 = arith.constant dense<0.000000e+00> : vector<1x8xf32>
    %93 = vector.multi_reduction <add>, %92, %cst_25 [2] : vector<1x8x8xf32> to vector<1x8xf32>
    %94 = vector.shape_cast %93 : vector<1x8xf32> to vector<1x8x1xf32>
    %cst_26 = arith.constant 1.000000e+00 : f32
    %95 = vector.broadcast %cst_26 : f32 to vector<1x8x1xf32>
    %96 = arith.divf %95, %94 : vector<1x8x1xf32>
    %97 = vector.broadcast %96 : vector<1x8x1xf32> to vector<1x8x8xf32>
    %98 = arith.mulf %92, %97 : vector<1x8x8xf32>
    %99 = arith.truncf %98 : vector<1x8x8xf32> to vector<1x8x8xbf16>
    %100 = vector.extract_strided_slice %50 {offsets = [0, 0, 16], sizes = [1, 8, 8], strides = [1, 1, 1]} : vector<1x8x32xbf16> to vector<1x8x8xbf16>
    "tpu.trace_start"() <{level = 10 : i32, message = "bqk,bkd->bqd"}> : () -> ()
    %cst_27 = arith.constant dense<0.000000e+00> : vector<1x8x8xf32>
    %101 = tpu.matmul %99, %100, %cst_27 {dimension_numbers = #tpu.dot_dimension_numbers<[2], [1], [1], [2], [0, 0, 0, 1, 1, 2], [0], [0]>} : vector<1x8x8xbf16>, vector<1x8x8xbf16>, vector<1x8x8xf32> -> vector<1x8x8xf32>
    "tpu.trace_stop"() : () -> ()
    %102 = vector.extract_strided_slice %46 {offsets = [0, 0, 24], sizes = [1, 8, 8], strides = [1, 1, 1]} : vector<1x8x32xbf16> to vector<1x8x8xbf16>
    %103 = vector.extract_strided_slice %48 {offsets = [0, 0, 24], sizes = [1, 8, 8], strides = [1, 1, 1]} : vector<1x8x32xbf16> to vector<1x8x8xbf16>
    "tpu.trace_start"() <{level = 10 : i32, message = "bqd,bkd->bqk"}> : () -> ()
    %cst_28 = arith.constant dense<0.000000e+00> : vector<1x8x8xf32>
    %104 = tpu.matmul %102, %103, %cst_28 {dimension_numbers = #tpu.dot_dimension_numbers<[2], [2], [1], [1], [0, 0, 0, 1, 1, 1], [0], [0]>} : vector<1x8x8xbf16>, vector<1x8x8xbf16>, vector<1x8x8xf32> -> vector<1x8x8xf32>
    "tpu.trace_stop"() : () -> ()
    %cst_29 = arith.constant dense<0xFF800000> : vector<1x8xf32>
    %105 = vector.multi_reduction <maximumf>, %104, %cst_29 [2] : vector<1x8x8xf32> to vector<1x8xf32>
    %106 = vector.shape_cast %105 : vector<1x8xf32> to vector<1x8x1xf32>
    %107 = vector.broadcast %106 : vector<1x8x1xf32> to vector<1x8x8xf32>
    %108 = arith.subf %104, %107 : vector<1x8x8xf32>
    %109 = math.exp %108 : vector<1x8x8xf32>
    %cst_30 = arith.constant dense<0.000000e+00> : vector<1x8xf32>
    %110 = vector.multi_reduction <add>, %109, %cst_30 [2] : vector<1x8x8xf32> to vector<1x8xf32>
    %111 = vector.shape_cast %110 : vector<1x8xf32> to vector<1x8x1xf32>
    %cst_31 = arith.constant 1.000000e+00 : f32
    %112 = vector.broadcast %cst_31 : f32 to vector<1x8x1xf32>
    %113 = arith.divf %112, %111 : vector<1x8x1xf32>
    %114 = vector.broadcast %113 : vector<1x8x1xf32> to vector<1x8x8xf32>
    %115 = arith.mulf %109, %114 : vector<1x8x8xf32>
    %116 = arith.truncf %115 : vector<1x8x8xf32> to vector<1x8x8xbf16>
    %117 = vector.extract_strided_slice %50 {offsets = [0, 0, 24], sizes = [1, 8, 8], strides = [1, 1, 1]} : vector<1x8x32xbf16> to vector<1x8x8xbf16>
    "tpu.trace_start"() <{level = 10 : i32, message = "bqk,bkd->bqd"}> : () -> ()
    %cst_32 = arith.constant dense<0.000000e+00> : vector<1x8x8xf32>
    %118 = tpu.matmul %116, %117, %cst_32 {dimension_numbers = #tpu.dot_dimension_numbers<[2], [1], [1], [2], [0, 0, 0, 1, 1, 2], [0], [0]>} : vector<1x8x8xbf16>, vector<1x8x8xbf16>, vector<1x8x8xf32> -> vector<1x8x8xf32>
    "tpu.trace_stop"() : () -> ()
    %119 = tpu.concatenate %67, %84, %101, %118 in 2 : vector<1x8x8xf32>, vector<1x8x8xf32>, vector<1x8x8xf32>, vector<1x8x8xf32> -> vector<1x8x32xf32>
    %120 = vector.shape_cast %119 : vector<1x8x32xf32> to vector<8x32xf32>
    %121 = arith.truncf %120 : vector<8x32xf32> to vector<8x32xbf16>
    %c0_33 = arith.constant 0 : index
    %c0_34 = arith.constant 0 : index
    %c0_35 = arith.constant 0 : index
    %122 = vector.load %arg4[%c0_33, %c0_34, %c0_35] : memref<1x32x32xbf16, #tpu.memory_space<vmem>>, vector<1x32x32xbf16>
    %123 = vector.shape_cast %122 : vector<1x32x32xbf16> to vector<32x32xbf16>
    %cst_36 = arith.constant dense<0.000000e+00> : vector<8x32xf32>
    %124 = tpu.matmul %121, %123, %cst_36 {dimension_numbers = #tpu.dot_dimension_numbers<[1], [0], [0], [1], [0, 0, 1, 1], [], []>} : vector<8x32xbf16>, vector<32x32xbf16>, vector<8x32xf32> -> vector<8x32xf32>
    %125 = arith.addf %13, %124 : vector<8x32xf32>
    %126 = vector.broadcast %8 : vector<1x32xf32> to vector<8x32xf32>
    %127 = arith.addf %125, %126 : vector<8x32xf32>
    %cst_37 = arith.constant dense<0.000000e+00> : vector<8xf32>
    %128 = vector.multi_reduction <add>, %127, %cst_37 [1] : vector<8x32xf32> to vector<8xf32>
    %129 = vector.shape_cast %128 : vector<8xf32> to vector<8x1xf32>
    %cst_38 = arith.constant 3.200000e+01 : f32
    %130 = vector.broadcast %cst_38 : f32 to vector<8x1xf32>
    %131 = arith.divf %129, %130 : vector<8x1xf32>
    %132 = vector.broadcast %131 : vector<8x1xf32> to vector<8x32xf32>
    %133 = arith.subf %127, %132 : vector<8x32xf32>
    %134 = arith.mulf %133, %133 : vector<8x32xf32>
    %cst_39 = arith.constant dense<0.000000e+00> : vector<8xf32>
    %135 = vector.multi_reduction <add>, %134, %cst_39 [1] : vector<8x32xf32> to vector<8xf32>
    %136 = vector.shape_cast %135 : vector<8xf32> to vector<8x1xf32>
    %cst_40 = arith.constant 3.100000e+01 : f32
    %137 = vector.broadcast %cst_40 : f32 to vector<8x1xf32>
    %138 = arith.divf %136, %137 : vector<8x1xf32>
    %139 = math.sqrt %138 : vector<8x1xf32>
    %140 = vector.broadcast %131 : vector<8x1xf32> to vector<8x32xf32>
    %141 = arith.subf %127, %140 : vector<8x32xf32>
    %142 = vector.broadcast %9 : vector<1x32xf32> to vector<8x32xf32>
    %143 = arith.mulf %142, %141 : vector<8x32xf32>
    %cst_41 = arith.constant 9.99999997E-7 : f32
    %144 = vector.broadcast %cst_41 : f32 to vector<8x1xf32>
    %145 = arith.addf %139, %144 : vector<8x1xf32>
    %146 = vector.broadcast %145 : vector<8x1xf32> to vector<8x32xf32>
    %147 = arith.divf %143, %146 : vector<8x32xf32>
    %148 = vector.broadcast %10 : vector<1x32xf32> to vector<8x32xf32>
    %149 = arith.addf %147, %148 : vector<8x32xf32>
    %150 = arith.truncf %149 : vector<8x32xf32> to vector<8x32xbf16>
    %c0_42 = arith.constant 0 : index
    %c0_43 = arith.constant 0 : index
    %c0_44 = arith.constant 0 : index
    %151 = vector.load %arg5[%c0_42, %c0_43, %c0_44] : memref<1x32x64xbf16, #tpu.memory_space<vmem>>, vector<1x32x64xbf16>
    %152 = vector.shape_cast %151 : vector<1x32x64xbf16> to vector<32x64xbf16>
    %cst_45 = arith.constant dense<0.000000e+00> : vector<8x64xf32>
    %153 = tpu.matmul %150, %152, %cst_45 {dimension_numbers = #tpu.dot_dimension_numbers<[1], [0], [0], [1], [0, 0, 1, 1], [], []>} : vector<8x32xbf16>, vector<32x64xbf16>, vector<8x64xf32> -> vector<8x64xf32>
    %154 = vector.broadcast %11 : vector<1x64xf32> to vector<8x64xf32>
    %155 = arith.addf %153, %154 : vector<8x64xf32>
    %cst_46 = arith.constant 0.000000e+00 : f32
    %156 = vector.broadcast %cst_46 : f32 to vector<8x64xf32>
    %157 = arith.maximumf %155, %156 : vector<8x64xf32>
    %158 = arith.truncf %157 : vector<8x64xf32> to vector<8x64xbf16>
    %c0_47 = arith.constant 0 : index
    %c0_48 = arith.constant 0 : index
    %c0_49 = arith.constant 0 : index
    %159 = vector.load %arg6[%c0_47, %c0_48, %c0_49] : memref<1x64x32xbf16, #tpu.memory_space<vmem>>, vector<1x64x32xbf16>
    %160 = vector.shape_cast %159 : vector<1x64x32xbf16> to vector<64x32xbf16>
    %cst_50 = arith.constant dense<0.000000e+00> : vector<8x32xf32>
    %161 = tpu.matmul %158, %160, %cst_50 {dimension_numbers = #tpu.dot_dimension_numbers<[1], [0], [0], [1], [0, 0, 1, 1], [], []>} : vector<8x64xbf16>, vector<64x32xbf16>, vector<8x32xf32> -> vector<8x32xf32>
    %162 = arith.addf %127, %161 : vector<8x32xf32>
    %163 = vector.broadcast %12 : vector<1x32xf32> to vector<8x32xf32>
    %164 = arith.addf %162, %163 : vector<8x32xf32>
    %c0_51 = arith.constant 0 : index
    %c0_52 = arith.constant 0 : index
    %165 = vector.load %arg10[%c0_51, %c0_52] : memref<8x32xf32, #tpu.memory_space<vmem>>, vector<8x32xf32>
    tpu.vector_store %arg10[%c0_51, %c0_52], %164 {strides = array<i32>} : memref<8x32xf32, #tpu.memory_space<vmem>>, vector<8x32xf32>,
    %c1_i32 = arith.constant 1 : i32
    %166 = arith.cmpi eq, %arg1, %c1_i32 : i32
    %167 = arith.extui %166 : i1 to i32
    %c0_i32_53 = arith.constant 0 : i32
    %168 = arith.cmpi ne, %167, %c0_i32_53 : i32
    scf.if %168 {
      %c0_54 = arith.constant 0 : index
      %c0_55 = arith.constant 0 : index
      %169 = vector.load %arg10[%c0_54, %c0_55] : memref<8x32xf32, #tpu.memory_space<vmem>>, vector<8x32xf32>
      %c0_56 = arith.constant 0 : index
      %c0_57 = arith.constant 0 : index
      %170 = vector.load %arg8[%c0_56, %c0_57] : memref<1x32xf32, #tpu.memory_space<vmem>>, vector<1x32xf32>
      %c0_58 = arith.constant 0 : index
      %c0_59 = arith.constant 0 : index
      %171 = vector.load %arg9[%c0_58, %c0_59] : memref<1x32xf32, #tpu.memory_space<vmem>>, vector<1x32xf32>
      %cst_60 = arith.constant dense<0.000000e+00> : vector<8xf32>
      %172 = vector.multi_reduction <add>, %169, %cst_60 [1] : vector<8x32xf32> to vector<8xf32>
      %173 = vector.shape_cast %172 : vector<8xf32> to vector<8x1xf32>
      %cst_61 = arith.constant 3.200000e+01 : f32
      %174 = vector.broadcast %cst_61 : f32 to vector<8x1xf32>
      %175 = arith.divf %173, %174 : vector<8x1xf32>
      %176 = vector.broadcast %175 : vector<8x1xf32> to vector<8x32xf32>
      %177 = arith.subf %169, %176 : vector<8x32xf32>
      %178 = arith.mulf %177, %177 : vector<8x32xf32>
      %cst_62 = arith.constant dense<0.000000e+00> : vector<8xf32>
      %179 = vector.multi_reduction <add>, %178, %cst_62 [1] : vector<8x32xf32> to vector<8xf32>
      %180 = vector.shape_cast %179 : vector<8xf32> to vector<8x1xf32>
      %cst_63 = arith.constant 3.100000e+01 : f32
      %181 = vector.broadcast %cst_63 : f32 to vector<8x1xf32>
      %182 = arith.divf %180, %181 : vector<8x1xf32>
      %183 = math.sqrt %182 : vector<8x1xf32>
      %184 = vector.broadcast %175 : vector<8x1xf32> to vector<8x32xf32>
      %185 = arith.subf %169, %184 : vector<8x32xf32>
      %186 = vector.broadcast %170 : vector<1x32xf32> to vector<8x32xf32>
      %187 = arith.mulf %186, %185 : vector<8x32xf32>
      %cst_64 = arith.constant 9.99999997E-7 : f32
      %188 = vector.broadcast %cst_64 : f32 to vector<8x1xf32>
      %189 = arith.addf %183, %188 : vector<8x1xf32>
      %190 = vector.broadcast %189 : vector<8x1xf32> to vector<8x32xf32>
      %191 = arith.divf %187, %190 : vector<8x32xf32>
      %192 = vector.broadcast %171 : vector<1x32xf32> to vector<8x32xf32>
      %193 = arith.addf %191, %192 : vector<8x32xf32>
      %c0_65 = arith.constant 0 : index
      %c0_66 = arith.constant 0 : index
      %194 = vector.load %arg10[%c0_65, %c0_66] : memref<8x32xf32, #tpu.memory_space<vmem>>, vector<8x32xf32>
      tpu.vector_store %arg10[%c0_65, %c0_66], %193 {strides = array<i32>} : memref<8x32xf32, #tpu.memory_space<vmem>>, vector<8x32xf32>,
    } else {
    }
    return
  }
  func.func @transform_0(%arg0: i32, %arg1: i32) -> (i32, i32) {
    %c0_i32 = arith.constant 0 : i32
    %c0_i32_0 = arith.constant 0 : i32
    return %arg0, %c0_i32 : i32, i32
  }
  func.func @transform_1(%arg0: i32, %arg1: i32) -> (i32, i32, i32) {
    %c0_i32 = arith.constant 0 : i32
    %c0_i32_0 = arith.constant 0 : i32
    %c0_i32_1 = arith.constant 0 : i32
    return %arg1, %c0_i32, %c0_i32_0 : i32, i32, i32
  }
  func.func @transform_2(%arg0: i32, %arg1: i32) -> (i32, i32, i32) {
    %c0_i32 = arith.constant 0 : i32
    %c0_i32_0 = arith.constant 0 : i32
    %c0_i32_1 = arith.constant 0 : i32
    return %arg1, %c0_i32, %c0_i32_0 : i32, i32, i32
  }
  func.func @transform_3(%arg0: i32, %arg1: i32) -> (i32, i32, i32) {
    %c0_i32 = arith.constant 0 : i32
    %c0_i32_0 = arith.constant 0 : i32
    %c0_i32_1 = arith.constant 0 : i32
    return %arg1, %c0_i32, %c0_i32_0 : i32, i32, i32
  }
  func.func @transform_4(%arg0: i32, %arg1: i32) -> (i32, i32, i32) {
    %c0_i32 = arith.constant 0 : i32
    %c0_i32_0 = arith.constant 0 : i32
    %c0_i32_1 = arith.constant 0 : i32
    return %arg1, %c0_i32, %c0_i32_0 : i32, i32, i32
  }
  func.func @transform_5(%arg0: i32, %arg1: i32) -> (i32, i32, i32) {
    %c0_i32 = arith.constant 0 : i32
    %c0_i32_0 = arith.constant 0 : i32
    %c0_i32_1 = arith.constant 0 : i32
    return %arg1, %c0_i32, %c0_i32_0 : i32, i32, i32
  }
  func.func @transform_6(%arg0: i32, %arg1: i32) -> (i32, i32) {
    %c0_i32 = arith.constant 0 : i32
    %c0_i32_0 = arith.constant 0 : i32
    %c0_i32_1 = arith.constant 0 : i32
    return %c0_i32, %c0_i32_0 : i32, i32
  }
  func.func @transform_7(%arg0: i32, %arg1: i32) -> (i32, i32) {
    %c0_i32 = arith.constant 0 : i32
    %c0_i32_0 = arith.constant 0 : i32
    %c0_i32_1 = arith.constant 0 : i32
    return %c0_i32, %c0_i32_0 : i32, i32
  }
  func.func @transform_8(%arg0: i32, %arg1: i32) -> (i32, i32) {
    %c0_i32 = arith.constant 0 : i32
    %c0_i32_0 = arith.constant 0 : i32
    return %arg0, %c0_i32 : i32, i32
  }
}

</mosaic_0001>

<llo_original>
// kernel: attention_block_forward.1
$region0: #{attention_block_forward.1}
  #allocation0 [shape = 'u32[]', space=smem, size = 0x4, offset = 0x4, fixed_abs, tag = 'smem constant byte address 0x4 - core index']
  #allocation1 [shape = 'u32[144,128]{1,0:T(1,128)}', space=vmem, size = 0x12000, scoped, tag = 'internal scratch']
  %s0 = inlined_call_operand.hbm [shape: f32[16,32], index: 0, kind: input, shape index: {}]
  %s1 = inlined_call_operand.vmem [shape: bf16[2,32,96], index: 1, kind: input, shape index: {}]
  %s2 = inlined_call_operand.vmem [shape: bf16[2,32,32], index: 2, kind: input, shape index: {}]
  %s3 = inlined_call_operand.vmem [shape: bf16[2,32,64], index: 3, kind: input, shape index: {}]
  %s4 = inlined_call_operand.vmem [shape: bf16[2,64,32], index: 4, kind: input, shape index: {}]
  %s5 = inlined_call_operand.hbm [shape: f32[2,8,96], index: 5, kind: input, shape index: {}]
  %s6 = inlined_call_operand.vmem [shape: f32[1,32], index: 6, kind: input, shape index: {}]
  %s7 = inlined_call_operand.vmem [shape: f32[1,32], index: 7, kind: input, shape index: {}]
  %s8 = inlined_call_operand.hbm [shape: f32[16,32], index: 8, kind: output, shape index: {}]
  %s9 = sld [smem:[#allocation0]]
  $region81: #{attention_block_forward.1} parent=0
    _
  %s11 = ssub.s32 1, %s9
  %s12 = scalar_select 0, %s11, %s9
  $region1: #{attention_block_forward.1} parent=0
    #allocation2 [shape = 'u8[8192]{0}', space=vmem, size = 0x2000, scoped, tag = 'input window, operand 0']
    #allocation3 [shape = 's32[2]{0}', space=sflag, size = 0x8, scoped, tag = 'scoped memory for attention_block_forward.1']
    #allocation4 [shape = 's32[2]{0}', space=sflag, size = 0x8, scoped, tag = 'scoped memory for attention_block_forward.1']
    #allocation5 [shape = 'u8[8192]{0}', space=vmem, size = 0x2000, scoped, tag = 'input window, operand 5']
    #allocation6 [shape = 's32[2]{0}', space=sflag, size = 0x8, scoped, tag = 'scoped memory for attention_block_forward.1']
    #allocation7 [shape = 'u8[8192]{0}', space=vmem, size = 0x2000, scoped, tag = 'output window, operand 0']
    %13 = vsyncpa [#allocation3], 0
    %s14 = scalar_lea.sflag [#allocation3], 1
    %15 = vsyncpa %s14, 0
    %16 = vsyncpa [#allocation6], 0
    %s17 = scalar_lea.sflag [#allocation6], 1
    %18 = vsyncpa %s17, 0
    %19 = vsyncpa [#allocation4], 0
    %s20 = scalar_lea.sflag [#allocation4], 1
    %21 = vsyncpa %s20, 0
    loop: start=0, step=1, limit=6
    $region2: #{attention_block_forward.1} parent=1 // loop_pre_header
      _
    $region3: #{attention_block_forward.1} parent=1 // loop_header
      %s23 = sphi 0, %s27
      %p24 = scmp.ge.s32.totalorder %s23, 6
      %s30 = sphi 0, %s42
      %s31 = sphi 0, %s38
      %s32 = sphi 0, %s30
      %s33 = sphi 0, %s31
      %s34 = sphi 0, %s32
      %s35 = sphi 0, %s33
      %s45 = sphi 0, %s47
      %s48 = sphi 0, %s45
      %s49 = sphi 0, %s48
      %s65 = sphi 0, %s49
      %s71 = sphi 0, %s73
      %s74 = sphi 0, %s71
      %s75 = sphi 0, %s74
      %s91 = sphi 0, %s75
      %s97 = sphi 0, %s99
      %s100 = sphi 0, %s97
      %s101 = sphi 0, %s100
      %s117 = sphi 0, %s101
      %s123 = sphi 0, %s125
      %s126 = sphi 0, %s123
      %s127 = sphi 0, %s126
      %s143 = sphi 0, %s127
      %s149 = sphi 0, %s151
      %s152 = sphi 0, %s149
      %s153 = sphi 0, %s152
      %s169 = sphi 0, %s153
      %s175 = sphi 0, %s177
      %s178 = sphi 0, %s175
      %s179 = sphi 0, %s178
      %s195 = sphi 0, %s179
      %s199 = sphi 0, %s199
      %s201 = sphi 0, %s199
      %s202 = sphi 0, %s201
      %s216 = sphi 0, %s202
      %s220 = sphi 0, %s220
      %s222 = sphi 0, %s220
      %s223 = sphi 0, %s222
      %s237 = sphi 0, %s223
      %s243 = sphi 0, %s245
      %s246 = sphi 0, %s243
      %s247 = sphi 0, %s246
      %s263 = sphi 0, %s247
    $region4: #{attention_block_forward.1} parent=1 // loop_header_branch
      %26 = sbr.rel (%p24) target = $region8
    $region5: #{attention_block_forward.1} parent=1 // loop_body
      %s28 = ssub.s32 %s23, 1
      %s29 = ssub.s32 %s23, 2
      %s36 = sadd.s32 1, %s31
      %p37 = scmp.ge.s32.totalorder %s36, 2
      %s38 = scalar_select %p37, 0, %s36
      %s39 = sadd.s32 1, %s30
      %s40 = scalar_select %p37, %s39, %s30
      %p41 = scmp.ge.s32.totalorder %s40, 2
      %s42 = scalar_select %p41, 0, %s40
      %s43 = ssub.s32 %s30, %s42
      %p44 = scmp.eq.s32.totalorder %s43, 0
      %s46 = sadd.s32 %s45, 1
      %s47 = scalar_select %p44, %s45, %s46
      %p50 = pneg %p44
      %p51 = scmp.eq.s32.totalorder %s23, 3
      %p52 = por %p50, %p51
      %p53 = scmp.ne.s32.totalorder %s45, %s48
      %p54 = scmp.eq.s32.totalorder %s23, 0
      %p55 = por %p53, %p54
      %p56 = scmp.ne.s32.totalorder %s45, %s48
      %p57 = scmp.eq.s32.totalorder %s28, 3
      %p58 = por %p56, %p57
      %p59 = scmp.ne.s32.totalorder %s48, %s49
      %p60 = scmp.eq.s32.totalorder %s28, 0
      %p61 = por %p59, %p60
      %p62 = scmp.ne.s32.totalorder %s48, %s49
      %p63 = scmp.eq.s32.totalorder %s29, 3
      %p64 = por %p62, %p63
      %p66 = scmp.ne.s32.totalorder %s49, %s65
      %p67 = scmp.eq.s32.totalorder %s29, 0
      %p68 = por %p66, %p67
      %s69 = ssub.s32 %s31, %s38
      %p70 = scmp.eq.s32.totalorder %s69, 0
      %s72 = sadd.s32 %s71, 1
      %s73 = scalar_select %p70, %s71, %s72
      %p76 = pneg %p70
      %p77 = scmp.eq.s32.totalorder %s23, 3
      %p78 = por %p76, %p77
      %p79 = scmp.ne.s32.totalorder %s71, %s74
      %p80 = scmp.eq.s32.totalorder %s23, 0
      %p81 = por %p79, %p80
      %p82 = scmp.ne.s32.totalorder %s71, %s74
      %p83 = scmp.eq.s32.totalorder %s28, 3
      %p84 = por %p82, %p83
      %p85 = scmp.ne.s32.totalorder %s74, %s75
      %p86 = scmp.eq.s32.totalorder %s28, 0
      %p87 = por %p85, %p86
      %p88 = scmp.ne.s32.totalorder %s74, %s75
      %p89 = scmp.eq.s32.totalorder %s29, 3
      %p90 = por %p88, %p89
      %p92 = scmp.ne.s32.totalorder %s75, %s91
      %p93 = scmp.eq.s32.totalorder %s29, 0
      %p94 = por %p92, %p93
      %s95 = ssub.s32 %s31, %s38
      %p96 = scmp.eq.s32.totalorder %s95, 0
      %s98 = sadd.s32 %s97, 1
      %s99 = scalar_select %p96, %s97, %s98
      %p102 = pneg %p96
      %p103 = scmp.eq.s32.totalorder %s23, 3
      %p104 = por %p102, %p103
      %p105 = scmp.ne.s32.totalorder %s97, %s100
      %p106 = scmp.eq.s32.totalorder %s23, 0
      %p107 = por %p105, %p106
      %p108 = scmp.ne.s32.totalorder %s97, %s100
      %p109 = scmp.eq.s32.totalorder %s28, 3
      %p110 = por %p108, %p109
      %p111 = scmp.ne.s32.totalorder %s100, %s101
      %p112 = scmp.eq.s32.totalorder %s28, 0
      %p113 = por %p111, %p112
      %p114 = scmp.ne.s32.totalorder %s100, %s101
      %p115 = scmp.eq.s32.totalorder %s29, 3
      %p116 = por %p114, %p115
      %p118 = scmp.ne.s32.totalorder %s101, %s117
      %p119 = scmp.eq.s32.totalorder %s29, 0
      %p120 = por %p118, %p119
      %s121 = ssub.s32 %s31, %s38
      %p122 = scmp.eq.s32.totalorder %s121, 0
      %s124 = sadd.s32 %s123, 1
      %s125 = scalar_select %p122, %s123, %s124
      %p128 = pneg %p122
      %p129 = scmp.eq.s32.totalorder %s23, 3
      %p130 = por %p128, %p129
      %p131 = scmp.ne.s32.totalorder %s123, %s126
      %p132 = scmp.eq.s32.totalorder %s23, 0
      %p133 = por %p131, %p132
      %p134 = scmp.ne.s32.totalorder %s123, %s126
      %p135 = scmp.eq.s32.totalorder %s28, 3
      %p136 = por %p134, %p135
      %p137 = scmp.ne.s32.totalorder %s126, %s127
      %p138 = scmp.eq.s32.totalorder %s28, 0
      %p139 = por %p137, %p138
      %p140 = scmp.ne.s32.totalorder %s126, %s127
      %p141 = scmp.eq.s32.totalorder %s29, 3
      %p142 = por %p140, %p141
      %p144 = scmp.ne.s32.totalorder %s127, %s143
      %p145 = scmp.eq.s32.totalorder %s29, 0
      %p146 = por %p144, %p145
      %s147 = ssub.s32 %s31, %s38
      %p148 = scmp.eq.s32.totalorder %s147, 0
      %s150 = sadd.s32 %s149, 1
      %s151 = scalar_select %p148, %s149, %s150
      %p154 = pneg %p148
      %p155 = scmp.eq.s32.totalorder %s23, 3
      %p156 = por %p154, %p155
      %p157 = scmp.ne.s32.totalorder %s149, %s152
      %p158 = scmp.eq.s32.totalorder %s23, 0
      %p159 = por %p157, %p158
      %p160 = scmp.ne.s32.totalorder %s149, %s152
      %p161 = scmp.eq.s32.totalorder %s28, 3
      %p162 = por %p160, %p161
      %p163 = scmp.ne.s32.totalorder %s152, %s153
      %p164 = scmp.eq.s32.totalorder %s28, 0
      %p165 = por %p163, %p164
      %p166 = scmp.ne.s32.totalorder %s152, %s153
      %p167 = scmp.eq.s32.totalorder %s29, 3
      %p168 = por %p166, %p167
      %p170 = scmp.ne.s32.totalorder %s153, %s169
      %p171 = scmp.eq.s32.totalorder %s29, 0
      %p172 = por %p170, %p171
      %s173 = ssub.s32 %s31, %s38
      %p174 = scmp.eq.s32.totalorder %s173, 0
      %s176 = sadd.s32 %s175, 1
      %s177 = scalar_select %p174, %s175, %s176
      %p180 = pneg %p174
      %p181 = scmp.eq.s32.totalorder %s23, 3
      %p182 = por %p180, %p181
      %p183 = scmp.ne.s32.totalorder %s175, %s178
      %p184 = scmp.eq.s32.totalorder %s23, 0
      %p185 = por %p183, %p184
      %p186 = scmp.ne.s32.totalorder %s175, %s178
      %p187 = scmp.eq.s32.totalorder %s28, 3
      %p188 = por %p186, %p187
      %p189 = scmp.ne.s32.totalorder %s178, %s179
      %p190 = scmp.eq.s32.totalorder %s28, 0
      %p191 = por %p189, %p190
      %p192 = scmp.ne.s32.totalorder %s178, %s179
      %p193 = scmp.eq.s32.totalorder %s29, 3
      %p194 = por %p192, %p193
      %p196 = scmp.ne.s32.totalorder %s179, %s195
      %p197 = scmp.eq.s32.totalorder %s29, 0
      %p198 = por %p196, %p197
      %s200 = sadd.s32 %s199, 1
      %p203 = scmp.eq.s32.totalorder %s23, 3
      %p204 = scmp.ne.s32.totalorder %s199, %s201
      %p205 = scmp.eq.s32.totalorder %s23, 0
      %p206 = por %p204, %p205
      %p207 = scmp.ne.s32.totalorder %s199, %s201
      %p208 = scmp.eq.s32.totalorder %s28, 3
      %p209 = por %p207, %p208
      %p210 = scmp.ne.s32.totalorder %s201, %s202
      %p211 = scmp.eq.s32.totalorder %s28, 0
      %p212 = por %p210, %p211
      %p213 = scmp.ne.s32.totalorder %s201, %s202
      %p214 = scmp.eq.s32.totalorder %s29, 3
      %p215 = por %p213, %p214
      %p217 = scmp.ne.s32.totalorder %s202, %s216
      %p218 = scmp.eq.s32.totalorder %s29, 0
      %p219 = por %p217, %p218
      %s221 = sadd.s32 %s220, 1
      %p224 = scmp.eq.s32.totalorder %s23, 3
      %p225 = scmp.ne.s32.totalorder %s220, %s222
      %p226 = scmp.eq.s32.totalorder %s23, 0
      %p227 = por %p225, %p226
      %p228 = scmp.ne.s32.totalorder %s220, %s222
      %p229 = scmp.eq.s32.totalorder %s28, 3
      %p230 = por %p228, %p229
      %p231 = scmp.ne.s32.totalorder %s222, %s223
      %p232 = scmp.eq.s32.totalorder %s28, 0
      %p233 = por %p231, %p232
      %p234 = scmp.ne.s32.totalorder %s222, %s223
      %p235 = scmp.eq.s32.totalorder %s29, 3
      %p236 = por %p234, %p235
      %p238 = scmp.ne.s32.totalorder %s223, %s237
      %p239 = scmp.eq.s32.totalorder %s29, 0
      %p240 = por %p238, %p239
      %s241 = ssub.s32 %s30, %s42
      %p242 = scmp.eq.s32.totalorder %s241, 0
      %s244 = sadd.s32 %s243, 1
      %s245 = scalar_select %p242, %s243, %s244
      %p248 = pneg %p242
      %p249 = scmp.eq.s32.totalorder %s23, 3
      %p250 = por %p248, %p249
      %p251 = scmp.ne.s32.totalorder %s243, %s246
      %p252 = scmp.eq.s32.totalorder %s23, 0
      %p253 = por %p251, %p252
      %p254 = scmp.ne.s32.totalorder %s243, %s246
      %p255 = scmp.eq.s32.totalorder %s28, 3
      %p256 = por %p254, %p255
      %p257 = scmp.ne.s32.totalorder %s246, %s247
      %p258 = scmp.eq.s32.totalorder %s28, 0
      %p259 = por %p257, %p258
      %p260 = scmp.ne.s32.totalorder %s246, %s247
      %p261 = scmp.eq.s32.totalorder %s29, 3
      %p262 = por %p260, %p261
      %p264 = scmp.ne.s32.totalorder %s247, %s263
      %p265 = scmp.eq.s32.totalorder %s29, 0
      %p266 = por %p264, %p265
      %p267 = scmp.le.s32.totalorder 1, %s23
      %p268 = scmp.lt.s32.totalorder %s23, 5
      %p269 = pnand %p267, %p268
      %p270 = pneg %p269
      // Predicated region
      $region9: #{attention_block_forward.1} parent=5 // pred_check
        _
      $region10: #{attention_block_forward.1} parent=5 // pred_check_branch
        %272 = sbr.rel (%p269) target = $region12
      $region11: #{attention_block_forward.1} parent=5 // pred_region
        %s273 = ssub.s32 %s23, 1
        // Predicated region
        $region13: #{attention_block_forward.1} parent=11 // pred_check
          %p274 = pneg %p212
        $region14: #{attention_block_forward.1} parent=11 // pred_check_branch
          %276 = sbr.rel (%p274) target = $region16
        $region15: #{attention_block_forward.1} parent=11 // pred_region
          _
        $region16: #{attention_block_forward.1} parent=11 // pred_fallthru
          _
        // Predicated region
        $region17: #{attention_block_forward.1} parent=11 // pred_check
          %p277 = pneg %p233
        $region18: #{attention_block_forward.1} parent=11 // pred_check_branch
          %279 = sbr.rel (%p277) target = $region20
        $region19: #{attention_block_forward.1} parent=11 // pred_region
          _
        $region20: #{attention_block_forward.1} parent=11 // pred_fallthru
          _
      $region12: #{attention_block_forward.1} parent=5 // pred_fallthru
        _
      %p280 = scmp.lt.s32.totalorder %s23, 4
      // Predicated region
      $region21: #{attention_block_forward.1} parent=5 // pred_check
        %p281 = pneg %p280
      $region22: #{attention_block_forward.1} parent=5 // pred_check_branch
        %283 = sbr.rel (%p281) target = $region24
      $region23: #{attention_block_forward.1} parent=5 // pred_region
        // Predicated region
        $region25: #{attention_block_forward.1} parent=23 // pred_check
          %p284 = pneg %p55
        $region26: #{attention_block_forward.1} parent=23 // pred_check_branch
          %286 = sbr.rel (%p284) target = $region28
        $region27: #{attention_block_forward.1} parent=23 // pred_region
          %s287 = sand.u32 %s45, 1
          %s288 = scalar_lea.sflag [#allocation3], %s287
          %s289 = sand.u32 %s45, 1
          %s290 = smul.addr %s289, 8
          %s291 = scalar_lea.vmem [#allocation2], %s290
          %s293 = ssub.s32 128, 128
          %294 = vsyncadd %s288, %s293
          %s295 = smul.addr %s30, 128
          %s296 = scalar_lea.hbm %s0, %s295
          %s298 = sshll.u32 %s291, 4
          %s299 = int_to_ptr.vmem [resolvable:$true] %s298
          %301 = dma.hbm_to_vmem [thread:$0]  %s296, 128, %s299, %s288
        $region28: #{attention_block_forward.1} parent=23 // pred_fallthru
          _
        // Predicated region
        $region29: #{attention_block_forward.1} parent=23 // pred_check
          %p302 = pneg %p81
        $region30: #{attention_block_forward.1} parent=23 // pred_check_branch
          %304 = sbr.rel (%p302) target = $region32
        $region31: #{attention_block_forward.1} parent=23 // pred_region
          %p305 = scmp.lt.s32.totalorder %s31, 1
          %s306 = scalar_select %p305, %s31, 1
          %s307 = smul.addr %s306, 4
          %s308 = smul.addr %s307, 4
          %s309 = scalar_lea.vmem %s1, %s308
        $region32: #{attention_block_forward.1} parent=23 // pred_fallthru
          _
        // Predicated region
        $region33: #{attention_block_forward.1} parent=23 // pred_check
          %p310 = pneg %p107
        $region34: #{attention_block_forward.1} parent=23 // pred_check_branch
          %312 = sbr.rel (%p310) target = $region36
        $region35: #{attention_block_forward.1} parent=23 // pred_region
          %p313 = scmp.lt.s32.totalorder %s31, 1
          %s314 = scalar_select %p313, %s31, 1
          %s315 = smul.addr %s314, 4
          %s316 = smul.addr %s315, 4
          %s317 = scalar_lea.vmem %s2, %s316
        $region36: #{attention_block_forward.1} parent=23 // pred_fallthru
          _
        // Predicated region
        $region37: #{attention_block_forward.1} parent=23 // pred_check
          %p318 = pneg %p133
        $region38: #{attention_block_forward.1} parent=23 // pred_check_branch
          %320 = sbr.rel (%p318) target = $region40
        $region39: #{attention_block_forward.1} parent=23 // pred_region
          %p321 = scmp.lt.s32.totalorder %s31, 1
          %s322 = scalar_select %p321, %s31, 1
          %s323 = smul.addr %s322, 4
          %s324 = smul.addr %s323, 4
          %s325 = scalar_lea.vmem %s3, %s324
        $region40: #{attention_block_forward.1} parent=23 // pred_fallthru
          _
        // Predicated region
        $region41: #{attention_block_forward.1} parent=23 // pred_check
          %p326 = pneg %p159
        $region42: #{attention_block_forward.1} parent=23 // pred_check_branch
          %328 = sbr.rel (%p326) target = $region44
        $region43: #{attention_block_forward.1} parent=23 // pred_region
          %p329 = scmp.lt.s32.totalorder %s31, 1
          %s330 = scalar_select %p329, %s31, 1
          %s331 = smul.addr %s330, 8
          %s332 = smul.addr %s331, 4
          %s333 = scalar_lea.vmem %s4, %s332
        $region44: #{attention_block_forward.1} parent=23 // pred_fallthru
          _
        // Predicated region
        $region45: #{attention_block_forward.1} parent=23 // pred_check
          %p334 = pneg %p185
        $region46: #{attention_block_forward.1} parent=23 // pred_check_branch
          %336 = sbr.rel (%p334) target = $region48
        $region47: #{attention_block_forward.1} parent=23 // pred_region
          %s337 = sand.u32 %s175, 1
          %s338 = scalar_lea.sflag [#allocation6], %s337
          %s339 = sand.u32 %s175, 1
          %s340 = smul.addr %s339, 8
          %s341 = scalar_lea.vmem [#allocation5], %s340
          %s343 = ssub.s32 128, 128
          %344 = vsyncadd %s338, %s343
          %s345 = smul.addr %s31, 128
          %s346 = scalar_lea.hbm %s5, %s345
          %s348 = sshll.u32 %s341, 4
          %s349 = int_to_ptr.vmem [resolvable:$true] %s348
          %351 = dma.hbm_to_vmem [thread:$0]  %s346, 128, %s349, %s338
        $region48: #{attention_block_forward.1} parent=23 // pred_fallthru
          _
      $region24: #{attention_block_forward.1} parent=5 // pred_fallthru
        _
      %p352 = scmp.le.s32.totalorder 1, %s23
      %p353 = scmp.lt.s32.totalorder %s23, 5
      %p354 = pnand %p352, %p353
      %p355 = pneg %p354
      // Predicated region
      $region49: #{attention_block_forward.1} parent=5 // pred_check
        _
      $region50: #{attention_block_forward.1} parent=5 // pred_check_branch
        %357 = sbr.rel (%p354) target = $region52
      $region51: #{attention_block_forward.1} parent=5 // pred_region
        %s358 = ssub.s32 %s23, 1
        %s359 = sand.u32 %s48, 1
        %s360 = scalar_lea.sflag [#allocation3], %s359
        %s361 = sand.u32 %s48, 1
        %s362 = smul.addr %s361, 8
        %s363 = scalar_lea.vmem [#allocation2], %s362
        // Predicated region
        $region53: #{attention_block_forward.1} parent=51 // pred_check
          %p364 = pneg %p61
        $region54: #{attention_block_forward.1} parent=51 // pred_check_branch
          %366 = sbr.rel (%p364) target = $region56
        $region55: #{attention_block_forward.1} parent=51 // pred_region
          %367 = dma.done %s360, 128
        $region56: #{attention_block_forward.1} parent=51 // pred_fallthru
          _
        %s368 = sand.u32 %s178, 1
        %s369 = scalar_lea.sflag [#allocation6], %s368
        %s370 = sand.u32 %s178, 1
        %s371 = smul.addr %s370, 8
        %s372 = scalar_lea.vmem [#allocation5], %s371
        // Predicated region
        $region57: #{attention_block_forward.1} parent=51 // pred_check
          %p373 = pneg %p191
        $region58: #{attention_block_forward.1} parent=51 // pred_check_branch
          %375 = sbr.rel (%p373) target = $region60
        $region59: #{attention_block_forward.1} parent=51 // pred_region
          %376 = dma.done %s369, 128
        $region60: #{attention_block_forward.1} parent=51 // pred_fallthru
          _
        %s377 = sand.u32 %s48, 1
        %s378 = scalar_lea.sflag [#allocation3], %s377
        %s379 = sand.u32 %s48, 1
        %s380 = smul.addr %s379, 8
        %s381 = scalar_lea.vmem [#allocation2], %s380
        %p382 = pneg %p61
        %p383 = pneg %p58
        %p384 = scmp.lt.s32.totalorder %s33, 1
        %s385 = scalar_select %p384, %s33, 1
        %s386 = smul.addr %s385, 4
        %s387 = smul.addr %s386, 4
        %s388 = scalar_lea.vmem %s1, %s387
        %p389 = pneg %p87
        %p390 = pneg %p84
        %p391 = scmp.lt.s32.totalorder %s33, 1
        %s392 = scalar_select %p391, %s33, 1
        %s393 = smul.addr %s392, 4
        %s394 = smul.addr %s393, 4
        %s395 = scalar_lea.vmem %s2, %s394
        %p396 = pneg %p113
        %p397 = pneg %p110
        %p398 = scmp.lt.s32.totalorder %s33, 1
        %s399 = scalar_select %p398, %s33, 1
        %s400 = smul.addr %s399, 4
        %s401 = smul.addr %s400, 4
        %s402 = scalar_lea.vmem %s3, %s401
        %p403 = pneg %p139
        %p404 = pneg %p136
        %p405 = scmp.lt.s32.totalorder %s33, 1
        %s406 = scalar_select %p405, %s33, 1
        %s407 = smul.addr %s406, 8
        %s408 = smul.addr %s407, 4
        %s409 = scalar_lea.vmem %s4, %s408
        %p410 = pneg %p165
        %p411 = pneg %p162
        %s412 = sand.u32 %s178, 1
        %s413 = scalar_lea.sflag [#allocation6], %s412
        %s414 = sand.u32 %s178, 1
        %s415 = smul.addr %s414, 8
        %s416 = scalar_lea.vmem [#allocation5], %s415
        %p417 = pneg %p191
        %p418 = pneg %p188
        %p419 = pneg %p212
        %p420 = pneg %p209
        %p421 = pneg %p233
        %p422 = pneg %p230
        %p423 = pneg %p259
        %p424 = pneg %p256
        %s425 = sand.u32 %s246, 1
        %s426 = scalar_lea.sflag [#allocation4], %s425
        %s427 = sand.u32 %s246, 1
        %s428 = smul.addr %s427, 8
        %s429 = scalar_lea.vmem [#allocation7], %s428
        %p430 = scmp.lt.s32.totalorder %s33, 1
        %s431 = scalar_select %p430, %s33, 1
        %s432 = smul.addr %s431, 4
        %s433 = smul.addr %s432, 4
        %s434 = scalar_lea.vmem %s1, %s433
        %p435 = scmp.lt.s32.totalorder %s33, 1
        %s436 = scalar_select %p435, %s33, 1
        %s437 = smul.addr %s436, 4
        %s438 = smul.addr %s437, 4
        %s439 = scalar_lea.vmem %s2, %s438
        %p440 = scmp.lt.s32.totalorder %s33, 1
        %s441 = scalar_select %p440, %s33, 1
        %s442 = smul.addr %s441, 4
        %s443 = smul.addr %s442, 4
        %s444 = scalar_lea.vmem %s3, %s443
        %p445 = scmp.lt.s32.totalorder %s33, 1
        %s446 = scalar_select %p445, %s33, 1
        %s447 = smul.addr %s446, 8
        %s448 = smul.addr %s447, 4
        %s449 = scalar_lea.vmem %s4, %s448
        %p451 = scmp.eq.s32.totalorder %s33, 0
        // Predicated region
        $region61: #{attention_block_forward.1} parent=51 // pred_check
          %p452 = pneg %p451
        $region62: #{attention_block_forward.1} parent=51 // pred_check_branch
          %454 = sbr.rel (%p452) target = $region64
        $region63: #{attention_block_forward.1} parent=51 // pred_region
          %v455 = vld [vmem:[%s363] sm:$0xff]
          %vm456 = vcmask 261120
          %457 = vst.msk [vmem:[%s429] sm:$0xff] %vm456, %v455
        $region64: #{attention_block_forward.1} parent=51 // pred_fallthru
          _
        %v458 = vld [vmem:[%s372] sm:$0xff]
        %v459 = vld [vmem:[%s429] sm:$0xff]
        %vm460 = vcmask 261120
        %v461 = vsel %vm460, %v459, 0.0
        %462 = vadd.xlane.f32.xlu0 %v461
        %v463 = vpop.xlane.xlu0 %462
        %v464 = vrcp.pop 32.0
        %v465 = vmul.f32 %v463, %v464
        %v466 = vsub.f32 %v459, %v465
        %v467 = vmul.f32 %v466, %v466
        %v468 = vsel %vm460, %v467, 0.0
        %469 = vadd.xlane.f32.xlu0 %v468
        %v470 = vpop.xlane.xlu0 %469
        %v471 = vrcp.pop 31.0
        %v472 = vmul.f32 %v470, %v471
        %v473 = vrsqrt.pop %v472
        %v474 = vmul.f32 %v472, %v473
        %vm475 = vcmp.eq.f32.partialorder %v472, inf
        %v476 = vsel %vm475, %v472, %v474
        %vm477 = vcmp.eq.f32.partialorder %v472, 0.0
        %v478 = vand.u32 %v472, 2147483648
        %v479 = vsel %vm477, %v478, %v476
        %v480 = vlaneseq
        %v481 = vshrl.u32 %v480, 7
        %v482 = vsub.s32 0, %v481
        %v483 = vrot.slane %v458, %v482
        %v484 = vmul.f32 %v483, %v466
        %v485 = vadd.f32 %v479, 1e-06
        %v486 = vrcp.pop %v485
        %v487 = vmul.f32 %v484, %v486
        %v488 = vlaneseq
        %v489 = vshrl.u32 %v488, 7
        %v490 = vsub.s32 1, %v489
        %v491 = vrot.slane %v458, %v490
        %v492 = vadd.f32 %v487, %v491
        %v493 = vpack.c.bf16 %v492, %v492
        %v494 = vld [vmem:[%s434] sm:$0xf]
        %v495 = vld [vmem:[%s434 + $0x4] sm:$0xf]
        %v496 = vld [vmem:[%s434 + $0x8] sm:$0xf]
        %v497 = vld [vmem:[%s434 + $0xc] sm:$0xf]
        %v498 = vlaneseq
        %v499 = vshrl.u32 %v498, 7
        %v500 = vsub.s32 2, %v499
        %v501 = vrot.slane %v458, %v500
        %v506 = vunpack.c.l.b16 %v494
        %v507 = vunpack.c.l.b16 %v495
        %v508 = vunpack.c.l.b16 %v496
        %v509 = vunpack.c.l.b16 %v497
        %v510 = vpack.c.b16 %v507, %v506
        %v511 = vpack.c.b16 %v509, %v508
        %v515 = vsel %vm460, %v493, 0
        %517 = vmatprep.subr.bf16.mxu0 0
        %518 = vmatpush1.bf16.msra.mxu0 0
        %519 = vmatprep.subr.bf16.mxu0 0
        %520 = vmatpush1.bf16.msra.mxu0 0
        %521 = vmatprep.subr.bf16.mxu0 0
        %522 = vmatpush1.bf16.msra.mxu0 0
        %523 = vmatprep.subr.bf16.mxu0 0
        %524 = vmatpush1.bf16.msra.mxu0 0
        %525 = vmatprep.subr.bf16.mxu0 0
        %526 = vmatpush1.bf16.msra.mxu0 0
        %527 = vmatprep.subr.bf16.mxu0 0
        %528 = vmatpush1.bf16.msra.mxu0 0
        %529 = vmatprep.subr.bf16.mxu0 0
        %530 = vmatpush1.bf16.msra.mxu0 %v511
        %531 = vmatprep.subr.bf16.mxu0 0
        %532 = vmatpush1.bf16.msra.mxu0 %v510
        %533 = vmatprep.subr.bf16.mxu0 0
        %534 = vmatpush2.bf16.msra.mxu0 0
        %535 = vmatprep.subr.bf16.mxu0 0
        %536 = vmatpush2.bf16.msra.mxu0 0
        %537 = vmatprep.subr.bf16.mxu0 0
        %538 = vmatpush2.bf16.msra.mxu0 0
        %539 = vmatprep.subr.bf16.mxu0 0
        %540 = vmatpush2.bf16.msra.mxu0 0
        %541 = vmatprep.subr.bf16.mxu0 0
        %542 = vmatpush2.bf16.msra.mxu0 0
        %543 = vmatprep.subr.bf16.mxu0 0
        %544 = vmatpush2.bf16.msra.mxu0 0
        %545 = vmatprep.subr.bf16.mxu0 0
        %546 = vmatpush2.bf16.msra.mxu0 0
        %547 = vmatprep.subr.bf16.mxu0 0
        %548 = vmatpush2.bf16.msra.mxu0 0
        %549 = vmatprep.mubr.bf16.mxu0 0
        %550 = vmatmul.mubr.bf16.gmra.mxu0 %v515
        %v551 = vpop.f32.mrf.mxu0
        %v552 = vadd.f32 %v501, %v551
        %v553 = vpop.f32.mrf.mxu0
        %v554 = vpop.f32.mrf.mxu0
        %v555 = vpop.f32.mrf.mxu0
        %556 = vdwg.mxu0
        %v557 = vpack.c.bf16 %v552, %v552
        %559 = vrot.lane.b32.xlu0 %v557, 96
        %v560 = vpop.permute.xlu0 %559
        %vm561 = vcmask 64512
        %v563 = vsel %vm561, %v557, 0
        %v566 = vsel %vm561, %v560, 0
        %568 = vmatprep.subr.bf16.mxu0 0
        %569 = vmatpush1.bf16.xpose.msra.mxu0 0
        %570 = vmatprep.subr.bf16.mxu0 0
        %571 = vmatpush1.bf16.xpose.msra.mxu0 0
        %572 = vmatprep.subr.bf16.mxu0 0
        %573 = vmatpush1.bf16.xpose.msra.mxu0 0
        %574 = vmatprep.subr.bf16.mxu0 0
        %575 = vmatpush1.bf16.xpose.msra.mxu0 0
        %576 = vmatprep.subr.bf16.mxu0 0
        %577 = vmatpush1.bf16.xpose.msra.mxu0 0
        %578 = vmatprep.subr.bf16.mxu0 0
        %579 = vmatpush1.bf16.xpose.msra.mxu0 0
        %580 = vmatprep.subr.bf16.mxu0 0
        %581 = vmatpush1.bf16.xpose.msra.mxu0 0
        %582 = vmatprep.subr.bf16.mxu0 0
        %583 = vmatpush1.bf16.xpose.msra.mxu0 %v566
        %584 = vmatprep.subr.bf16.mxu0 0
        %585 = vmatpush2.bf16.xpose.msra.mxu0 0
        %586 = vmatprep.subr.bf16.mxu0 0
        %587 = vmatpush2.bf16.xpose.msra.mxu0 0
        %588 = vmatprep.subr.bf16.mxu0 0
        %589 = vmatpush2.bf16.xpose.msra.mxu0 0
        %590 = vmatprep.subr.bf16.mxu0 0
        %591 = vmatpush2.bf16.xpose.msra.mxu0 0
        %592 = vmatprep.subr.bf16.mxu0 0
        %593 = vmatpush2.bf16.xpose.msra.mxu0 0
        %594 = vmatprep.subr.bf16.mxu0 0
        %595 = vmatpush2.bf16.xpose.msra.mxu0 0
        %596 = vmatprep.subr.bf16.mxu0 0
        %597 = vmatpush2.bf16.xpose.msra.mxu0 0
        %598 = vmatprep.subr.bf16.mxu0 0
        %599 = vmatpush2.bf16.xpose.msra.mxu0 0
        %600 = vmatprep.mubr.bf16.mxu0 0
        %601 = vmatmul.mubr.bf16.gmra.mxu0 %v563
        %v602 = vpop.f32.mrf.mxu0
        %v603 = vadd.f32 0.0, %v602
        %v604 = vpop.f32.mrf.mxu0
        %v605 = vpop.f32.mrf.mxu0
        %v606 = vpop.f32.mrf.mxu0
        %607 = vdwg.mxu0
        %v608 = vsel %vm561, %v603, -inf
        %609 = vmax.xlane.f32.xlu0 %v608
        %v610 = vpop.xlane.xlu0 %609
        %v611 = vsub.f32 %v603, %v610
        %v612 = vmul.f32 %v611, 1.442695
        %v613 = vpow.pop %v612
        %v614 = vsel %vm561, %v613, 0.0
        %615 = vadd.xlane.f32.xlu0 %v614
        %v616 = vpop.xlane.xlu0 %615
        %v617 = vrcp.pop %v616
        %v618 = vmul.f32 1.0, %v617
        %v619 = vmul.f32 %v613, %v618
        %v620 = vpack.c.bf16 %v619, %v619
        %621 = vrot.lane.b32.xlu0 %v557, 64
        %v622 = vpop.permute.xlu0 %621
        %v624 = vsel %vm561, %v620, 0
        %vm626 = vcmask 1043456
        %v628 = vsel %vm626, %v622, 0
        %630 = vmatprep.subr.bf16.mxu0 0
        %631 = vmatpush1.bf16.msra.mxu0 0
        %632 = vmatprep.subr.bf16.mxu0 0
        %633 = vmatpush1.bf16.msra.mxu0 0
        %634 = vmatprep.subr.bf16.mxu0 0
        %635 = vmatpush1.bf16.msra.mxu0 0
        %636 = vmatprep.subr.bf16.mxu0 0
        %637 = vmatpush1.bf16.msra.mxu0 0
        %638 = vmatprep.subr.bf16.mxu0 0
        %639 = vmatpush1.bf16.msra.mxu0 0
        %640 = vmatprep.subr.bf16.mxu0 0
        %641 = vmatpush1.bf16.msra.mxu0 0
        %642 = vmatprep.subr.bf16.mxu0 0
        %643 = vmatpush1.bf16.msra.mxu0 0
        %644 = vmatprep.subr.bf16.mxu0 0
        %645 = vmatpush1.bf16.msra.mxu0 %v628
        %646 = vmatprep.subr.bf16.mxu0 0
        %647 = vmatpush2.bf16.msra.mxu0 0
        %648 = vmatprep.subr.bf16.mxu0 0
        %649 = vmatpush2.bf16.msra.mxu0 0
        %650 = vmatprep.subr.bf16.mxu0 0
        %651 = vmatpush2.bf16.msra.mxu0 0
        %652 = vmatprep.subr.bf16.mxu0 0
        %653 = vmatpush2.bf16.msra.mxu0 0
        %654 = vmatprep.subr.bf16.mxu0 0
        %655 = vmatpush2.bf16.msra.mxu0 0
        %656 = vmatprep.subr.bf16.mxu0 0
        %657 = vmatpush2.bf16.msra.mxu0 0
        %658 = vmatprep.subr.bf16.mxu0 0
        %659 = vmatpush2.bf16.msra.mxu0 0
        %660 = vmatprep.subr.bf16.mxu0 0
        %661 = vmatpush2.bf16.msra.mxu0 0
        %662 = vmatprep.mubr.bf16.mxu0 0
        %663 = vmatmul.mubr.bf16.gmra.mxu0 %v624
        %v664 = vpop.f32.mrf.mxu0
        %v665 = vadd.f32 0.0, %v664
        %v666 = vpop.f32.mrf.mxu0
        %v667 = vpop.f32.mrf.mxu0
        %v668 = vpop.f32.mrf.mxu0
        %669 = vdwg.mxu0
        %670 = vrot.lane.b32.xlu0 %v557, 120
        %v671 = vpop.permute.xlu0 %670
        %672 = vrot.lane.b32.xlu0 %v557, 88
        %v673 = vpop.permute.xlu0 %672
        %v675 = vsel %vm561, %v671, 0
        %v678 = vsel %vm561, %v673, 0
        %680 = vmatprep.subr.bf16.mxu0 0
        %681 = vmatpush1.bf16.xpose.msra.mxu0 0
        %682 = vmatprep.subr.bf16.mxu0 0
        %683 = vmatpush1.bf16.xpose.msra.mxu0 0
        %684 = vmatprep.subr.bf16.mxu0 0
        %685 = vmatpush1.bf16.xpose.msra.mxu0 0
        %686 = vmatprep.subr.bf16.mxu0 0
        %687 = vmatpush1.bf16.xpose.msra.mxu0 0
        %688 = vmatprep.subr.bf16.mxu0 0
        %689 = vmatpush1.bf16.xpose.msra.mxu0 0
        %690 = vmatprep.subr.bf16.mxu0 0
        %691 = vmatpush1.bf16.xpose.msra.mxu0 0
        %692 = vmatprep.subr.bf16.mxu0 0
        %693 = vmatpush1.bf16.xpose.msra.mxu0 0
        %694 = vmatprep.subr.bf16.mxu0 0
        %695 = vmatpush1.bf16.xpose.msra.mxu0 %v678
        %696 = vmatprep.subr.bf16.mxu0 0
        %697 = vmatpush2.bf16.xpose.msra.mxu0 0
        %698 = vmatprep.subr.bf16.mxu0 0
        %699 = vmatpush2.bf16.xpose.msra.mxu0 0
        %700 = vmatprep.subr.bf16.mxu0 0
        %701 = vmatpush2.bf16.xpose.msra.mxu0 0
        %702 = vmatprep.subr.bf16.mxu0 0
        %703 = vmatpush2.bf16.xpose.msra.mxu0 0
        %704 = vmatprep.subr.bf16.mxu0 0
        %705 = vmatpush2.bf16.xpose.msra.mxu0 0
        %706 = vmatprep.subr.bf16.mxu0 0
        %707 = vmatpush2.bf16.xpose.msra.mxu0 0
        %708 = vmatprep.subr.bf16.mxu0 0
        %709 = vmatpush2.bf16.xpose.msra.mxu0 0
        %710 = vmatprep.subr.bf16.mxu0 0
        %711 = vmatpush2.bf16.xpose.msra.mxu0 0
        %712 = vmatprep.mubr.bf16.mxu0 0
        %713 = vmatmul.mubr.bf16.gmra.mxu0 %v675
        %v714 = vpop.f32.mrf.mxu0
        %v715 = vadd.f32 0.0, %v714
        %v716 = vpop.f32.mrf.mxu0
        %v717 = vpop.f32.mrf.mxu0
        %v718 = vpop.f32.mrf.mxu0
        %719 = vdwg.mxu0
        %v720 = vsel %vm561, %v715, -inf
        %721 = vmax.xlane.f32.xlu0 %v720
        %v722 = vpop.xlane.xlu0 %721
        %v723 = vsub.f32 %v715, %v722
        %v724 = vmul.f32 %v723, 1.442695
        %v725 = vpow.pop %v724
        %v726 = vsel %vm561, %v725, 0.0
        %727 = vadd.xlane.f32.xlu0 %v726
        %v728 = vpop.xlane.xlu0 %727
        %v729 = vrcp.pop %v728
        %v730 = vmul.f32 1.0, %v729
        %v731 = vmul.f32 %v725, %v730
        %v732 = vpack.c.bf16 %v731, %v731
        %733 = vrot.lane.b32.xlu0 %v557, 56
        %v734 = vpop.permute.xlu0 %733
        %v736 = vsel %vm561, %v732, 0
        %v739 = vsel %vm626, %v734, 0
        %741 = vmatprep.subr.bf16.mxu0 0
        %742 = vmatpush1.bf16.msra.mxu0 0
        %743 = vmatprep.subr.bf16.mxu0 0
        %744 = vmatpush1.bf16.msra.mxu0 0
        %745 = vmatprep.subr.bf16.mxu0 0
        %746 = vmatpush1.bf16.msra.mxu0 0
        %747 = vmatprep.subr.bf16.mxu0 0
        %748 = vmatpush1.bf16.msra.mxu0 0
        %749 = vmatprep.subr.bf16.mxu0 0
        %750 = vmatpush1.bf16.msra.mxu0 0
        %751 = vmatprep.subr.bf16.mxu0 0
        %752 = vmatpush1.bf16.msra.mxu0 0
        %753 = vmatprep.subr.bf16.mxu0 0
        %754 = vmatpush1.bf16.msra.mxu0 0
        %755 = vmatprep.subr.bf16.mxu0 0
        %756 = vmatpush1.bf16.msra.mxu0 %v739
        %757 = vmatprep.subr.bf16.mxu0 0
        %758 = vmatpush2.bf16.msra.mxu0 0
        %759 = vmatprep.subr.bf16.mxu0 0
        %760 = vmatpush2.bf16.msra.mxu0 0
        %761 = vmatprep.subr.bf16.mxu0 0
        %762 = vmatpush2.bf16.msra.mxu0 0
        %763 = vmatprep.subr.bf16.mxu0 0
        %764 = vmatpush2.bf16.msra.mxu0 0
        %765 = vmatprep.subr.bf16.mxu0 0
        %766 = vmatpush2.bf16.msra.mxu0 0
        %767 = vmatprep.subr.bf16.mxu0 0
        %768 = vmatpush2.bf16.msra.mxu0 0
        %769 = vmatprep.subr.bf16.mxu0 0
        %770 = vmatpush2.bf16.msra.mxu0 0
        %771 = vmatprep.subr.bf16.mxu0 0
        %772 = vmatpush2.bf16.msra.mxu0 0
        %773 = vmatprep.mubr.bf16.mxu0 0
        %774 = vmatmul.mubr.bf16.gmra.mxu0 %v736
        %v775 = vpop.f32.mrf.mxu0
        %v776 = vadd.f32 0.0, %v775
        %v777 = vpop.f32.mrf.mxu0
        %v778 = vpop.f32.mrf.mxu0
        %v779 = vpop.f32.mrf.mxu0
        %780 = vdwg.mxu0
        %781 = vrot.lane.b32.xlu0 %v557, 112
        %v782 = vpop.permute.xlu0 %781
        %783 = vrot.lane.b32.xlu0 %v557, 80
        %v784 = vpop.permute.xlu0 %783
        %v786 = vsel %vm561, %v782, 0
        %v789 = vsel %vm561, %v784, 0
        %791 = vmatprep.subr.bf16.mxu0 0
        %792 = vmatpush1.bf16.xpose.msra.mxu0 0
        %793 = vmatprep.subr.bf16.mxu0 0
        %794 = vmatpush1.bf16.xpose.msra.mxu0 0
        %795 = vmatprep.subr.bf16.mxu0 0
        %796 = vmatpush1.bf16.xpose.msra.mxu0 0
        %797 = vmatprep.subr.bf16.mxu0 0
        %798 = vmatpush1.bf16.xpose.msra.mxu0 0
        %799 = vmatprep.subr.bf16.mxu0 0
        %800 = vmatpush1.bf16.xpose.msra.mxu0 0
        %801 = vmatprep.subr.bf16.mxu0 0
        %802 = vmatpush1.bf16.xpose.msra.mxu0 0
        %803 = vmatprep.subr.bf16.mxu0 0
        %804 = vmatpush1.bf16.xpose.msra.mxu0 0
        %805 = vmatprep.subr.bf16.mxu0 0
        %806 = vmatpush1.bf16.xpose.msra.mxu0 %v789
        %807 = vmatprep.subr.bf16.mxu0 0
        %808 = vmatpush2.bf16.xpose.msra.mxu0 0
        %809 = vmatprep.subr.bf16.mxu0 0
        %810 = vmatpush2.bf16.xpose.msra.mxu0 0
        %811 = vmatprep.subr.bf16.mxu0 0
        %812 = vmatpush2.bf16.xpose.msra.mxu0 0
        %813 = vmatprep.subr.bf16.mxu0 0
        %814 = vmatpush2.bf16.xpose.msra.mxu0 0
        %815 = vmatprep.subr.bf16.mxu0 0
        %816 = vmatpush2.bf16.xpose.msra.mxu0 0
        %817 = vmatprep.subr.bf16.mxu0 0
        %818 = vmatpush2.bf16.xpose.msra.mxu0 0
        %819 = vmatprep.subr.bf16.mxu0 0
        %820 = vmatpush2.bf16.xpose.msra.mxu0 0
        %821 = vmatprep.subr.bf16.mxu0 0
        %822 = vmatpush2.bf16.xpose.msra.mxu0 0
        %823 = vmatprep.mubr.bf16.mxu0 0
        %824 = vmatmul.mubr.bf16.gmra.mxu0 %v786
        %v825 = vpop.f32.mrf.mxu0
        %v826 = vadd.f32 0.0, %v825
        %v827 = vpop.f32.mrf.mxu0
        %v828 = vpop.f32.mrf.mxu0
        %v829 = vpop.f32.mrf.mxu0
        %830 = vdwg.mxu0
        %v831 = vsel %vm561, %v826, -inf
        %832 = vmax.xlane.f32.xlu0 %v831
        %v833 = vpop.xlane.xlu0 %832
        %v834 = vsub.f32 %v826, %v833
        %v835 = vmul.f32 %v834, 1.442695
        %v836 = vpow.pop %v835
        %v837 = vsel %vm561, %v836, 0.0
        %838 = vadd.xlane.f32.xlu0 %v837
        %v839 = vpop.xlane.xlu0 %838
        %v840 = vrcp.pop %v839
        %v841 = vmul.f32 1.0, %v840
        %v842 = vmul.f32 %v836, %v841
        %v843 = vpack.c.bf16 %v842, %v842
        %844 = vrot.lane.b32.xlu0 %v557, 48
        %v845 = vpop.permute.xlu0 %844
        %v847 = vsel %vm561, %v843, 0
        %v850 = vsel %vm626, %v845, 0
        %852 = vmatprep.subr.bf16.mxu0 0
        %853 = vmatpush1.bf16.msra.mxu0 0
        %854 = vmatprep.subr.bf16.mxu0 0
        %855 = vmatpush1.bf16.msra.mxu0 0
        %856 = vmatprep.subr.bf16.mxu0 0
        %857 = vmatpush1.bf16.msra.mxu0 0
        %858 = vmatprep.subr.bf16.mxu0 0
        %859 = vmatpush1.bf16.msra.mxu0 0
        %860 = vmatprep.subr.bf16.mxu0 0
        %861 = vmatpush1.bf16.msra.mxu0 0
        %862 = vmatprep.subr.bf16.mxu0 0
        %863 = vmatpush1.bf16.msra.mxu0 0
        %864 = vmatprep.subr.bf16.mxu0 0
        %865 = vmatpush1.bf16.msra.mxu0 0
        %866 = vmatprep.subr.bf16.mxu0 0
        %867 = vmatpush1.bf16.msra.mxu0 %v850
        %868 = vmatprep.subr.bf16.mxu0 0
        %869 = vmatpush2.bf16.msra.mxu0 0
        %870 = vmatprep.subr.bf16.mxu0 0
        %871 = vmatpush2.bf16.msra.mxu0 0
        %872 = vmatprep.subr.bf16.mxu0 0
        %873 = vmatpush2.bf16.msra.mxu0 0
        %874 = vmatprep.subr.bf16.mxu0 0
        %875 = vmatpush2.bf16.msra.mxu0 0
        %876 = vmatprep.subr.bf16.mxu0 0
        %877 = vmatpush2.bf16.msra.mxu0 0
        %878 = vmatprep.subr.bf16.mxu0 0
        %879 = vmatpush2.bf16.msra.mxu0 0
        %880 = vmatprep.subr.bf16.mxu0 0
        %881 = vmatpush2.bf16.msra.mxu0 0
        %882 = vmatprep.subr.bf16.mxu0 0
        %883 = vmatpush2.bf16.msra.mxu0 0
        %884 = vmatprep.mubr.bf16.mxu0 0
        %885 = vmatmul.mubr.bf16.gmra.mxu0 %v847
        %v886 = vpop.f32.mrf.mxu0
        %v887 = vadd.f32 0.0, %v886
        %v888 = vpop.f32.mrf.mxu0
        %v889 = vpop.f32.mrf.mxu0
        %v890 = vpop.f32.mrf.mxu0
        %891 = vdwg.mxu0
        %892 = vrot.lane.b32.xlu0 %v557, 104
        %v893 = vpop.permute.xlu0 %892
        %894 = vrot.lane.b32.xlu0 %v557, 72
        %v895 = vpop.permute.xlu0 %894
        %v897 = vsel %vm561, %v893, 0
        %v900 = vsel %vm561, %v895, 0
        %902 = vmatprep.subr.bf16.mxu0 0
        %903 = vmatpush1.bf16.xpose.msra.mxu0 0
        %904 = vmatprep.subr.bf16.mxu0 0
        %905 = vmatpush1.bf16.xpose.msra.mxu0 0
        %906 = vmatprep.subr.bf16.mxu0 0
        %907 = vmatpush1.bf16.xpose.msra.mxu0 0
        %908 = vmatprep.subr.bf16.mxu0 0
        %909 = vmatpush1.bf16.xpose.msra.mxu0 0
        %910 = vmatprep.subr.bf16.mxu0 0
        %911 = vmatpush1.bf16.xpose.msra.mxu0 0
        %912 = vmatprep.subr.bf16.mxu0 0
        %913 = vmatpush1.bf16.xpose.msra.mxu0 0
        %914 = vmatprep.subr.bf16.mxu0 0
        %915 = vmatpush1.bf16.xpose.msra.mxu0 0
        %916 = vmatprep.subr.bf16.mxu0 0
        %917 = vmatpush1.bf16.xpose.msra.mxu0 %v900
        %918 = vmatprep.subr.bf16.mxu0 0
        %919 = vmatpush2.bf16.xpose.msra.mxu0 0
        %920 = vmatprep.subr.bf16.mxu0 0
        %921 = vmatpush2.bf16.xpose.msra.mxu0 0
        %922 = vmatprep.subr.bf16.mxu0 0
        %923 = vmatpush2.bf16.xpose.msra.mxu0 0
        %924 = vmatprep.subr.bf16.mxu0 0
        %925 = vmatpush2.bf16.xpose.msra.mxu0 0
        %926 = vmatprep.subr.bf16.mxu0 0
        %927 = vmatpush2.bf16.xpose.msra.mxu0 0
        %928 = vmatprep.subr.bf16.mxu0 0
        %929 = vmatpush2.bf16.xpose.msra.mxu0 0
        %930 = vmatprep.subr.bf16.mxu0 0
        %931 = vmatpush2.bf16.xpose.msra.mxu0 0
        %932 = vmatprep.subr.bf16.mxu0 0
        %933 = vmatpush2.bf16.xpose.msra.mxu0 0
        %934 = vmatprep.mubr.bf16.mxu0 0
        %935 = vmatmul.mubr.bf16.gmra.mxu0 %v897
        %v936 = vpop.f32.mrf.mxu0
        %v937 = vadd.f32 0.0, %v936
        %v938 = vpop.f32.mrf.mxu0
        %v939 = vpop.f32.mrf.mxu0
        %v940 = vpop.f32.mrf.mxu0
        %941 = vdwg.mxu0
        %v942 = vsel %vm561, %v937, -inf
        %943 = vmax.xlane.f32.xlu0 %v942
        %v944 = vpop.xlane.xlu0 %943
        %v945 = vsub.f32 %v937, %v944
        %v946 = vmul.f32 %v945, 1.442695
        %v947 = vpow.pop %v946
        %v948 = vsel %vm561, %v947, 0.0
        %949 = vadd.xlane.f32.xlu0 %v948
        %v950 = vpop.xlane.xlu0 %949
        %v951 = vrcp.pop %v950
        %v952 = vmul.f32 1.0, %v951
        %v953 = vmul.f32 %v947, %v952
        %v954 = vpack.c.bf16 %v953, %v953
        %955 = vrot.lane.b32.xlu0 %v557, 40
        %v956 = vpop.permute.xlu0 %955
        %v958 = vsel %vm561, %v954, 0
        %v961 = vsel %vm626, %v956, 0
        %963 = vmatprep.subr.bf16.mxu0 0
        %964 = vmatpush1.bf16.msra.mxu0 0
        %965 = vmatprep.subr.bf16.mxu0 0
        %966 = vmatpush1.bf16.msra.mxu0 0
        %967 = vmatprep.subr.bf16.mxu0 0
        %968 = vmatpush1.bf16.msra.mxu0 0
        %969 = vmatprep.subr.bf16.mxu0 0
        %970 = vmatpush1.bf16.msra.mxu0 0
        %971 = vmatprep.subr.bf16.mxu0 0
        %972 = vmatpush1.bf16.msra.mxu0 0
        %973 = vmatprep.subr.bf16.mxu0 0
        %974 = vmatpush1.bf16.msra.mxu0 0
        %975 = vmatprep.subr.bf16.mxu0 0
        %976 = vmatpush1.bf16.msra.mxu0 0
        %977 = vmatprep.subr.bf16.mxu0 0
        %978 = vmatpush1.bf16.msra.mxu0 %v961
        %979 = vmatprep.subr.bf16.mxu0 0
        %980 = vmatpush2.bf16.msra.mxu0 0
        %981 = vmatprep.subr.bf16.mxu0 0
        %982 = vmatpush2.bf16.msra.mxu0 0
        %983 = vmatprep.subr.bf16.mxu0 0
        %984 = vmatpush2.bf16.msra.mxu0 0
        %985 = vmatprep.subr.bf16.mxu0 0
        %986 = vmatpush2.bf16.msra.mxu0 0
        %987 = vmatprep.subr.bf16.mxu0 0
        %988 = vmatpush2.bf16.msra.mxu0 0
        %989 = vmatprep.subr.bf16.mxu0 0
        %990 = vmatpush2.bf16.msra.mxu0 0
        %991 = vmatprep.subr.bf16.mxu0 0
        %992 = vmatpush2.bf16.msra.mxu0 0
        %993 = vmatprep.subr.bf16.mxu0 0
        %994 = vmatpush2.bf16.msra.mxu0 0
        %995 = vmatprep.mubr.bf16.mxu0 0
        %996 = vmatmul.mubr.bf16.gmra.mxu0 %v958
        %v997 = vpop.f32.mrf.mxu0
        %v998 = vadd.f32 0.0, %v997
        %v999 = vpop.f32.mrf.mxu0
        %v1000 = vpop.f32.mrf.mxu0
        %v1001 = vpop.f32.mrf.mxu0
        %1002 = vdwg.mxu0
        %1004 = vrot.lane.b32.xlu0 %v776, 8
        %v1005 = vpop.permute.xlu0 %1004
        %1008 = vrot.lane.b32.xlu0 %v887, 16
        %v1009 = vpop.permute.xlu0 %1008
        %1012 = vrot.lane.b32.xlu0 %v998, 24
        %v1013 = vpop.permute.xlu0 %1012
        %v1015 = vsel %vm561, %v665, %v1005
        %vm1016 = vcmask 130048
        %v1017 = vsel %vm1016, %v1015, %v1009
        %vm1018 = vcmask 195584
        %v1019 = vsel %vm1018, %v1017, %v1013
        %v1020 = vpack.c.bf16 %v1019, %v1019
        %v1021 = vld [vmem:[%s439] sm:$0xf]
        %v1022 = vld [vmem:[%s439 + $0x4] sm:$0xf]
        %v1023 = vld [vmem:[%s439 + $0x8] sm:$0xf]
        %v1024 = vld [vmem:[%s439 + $0xc] sm:$0xf]
        %v1029 = vunpack.c.l.b16 %v1021
        %v1030 = vunpack.c.l.b16 %v1022
        %v1031 = vunpack.c.l.b16 %v1023
        %v1032 = vunpack.c.l.b16 %v1024
        %v1033 = vpack.c.b16 %v1030, %v1029
        %v1034 = vpack.c.b16 %v1032, %v1031
        %v1038 = vsel %vm460, %v1020, 0
        %1040 = vmatprep.subr.bf16.mxu0 0
        %1041 = vmatpush1.bf16.msra.mxu0 0
        %1042 = vmatprep.subr.bf16.mxu0 0
        %1043 = vmatpush1.bf16.msra.mxu0 0
        %1044 = vmatprep.subr.bf16.mxu0 0
        %1045 = vmatpush1.bf16.msra.mxu0 0
        %1046 = vmatprep.subr.bf16.mxu0 0
        %1047 = vmatpush1.bf16.msra.mxu0 0
        %1048 = vmatprep.subr.bf16.mxu0 0
        %1049 = vmatpush1.bf16.msra.mxu0 0
        %1050 = vmatprep.subr.bf16.mxu0 0
        %1051 = vmatpush1.bf16.msra.mxu0 0
        %1052 = vmatprep.subr.bf16.mxu0 0
        %1053 = vmatpush1.bf16.msra.mxu0 %v1034
        %1054 = vmatprep.subr.bf16.mxu0 0
        %1055 = vmatpush1.bf16.msra.mxu0 %v1033
        %1056 = vmatprep.subr.bf16.mxu0 0
        %1057 = vmatpush2.bf16.msra.mxu0 0
        %1058 = vmatprep.subr.bf16.mxu0 0
        %1059 = vmatpush2.bf16.msra.mxu0 0
        %1060 = vmatprep.subr.bf16.mxu0 0
        %1061 = vmatpush2.bf16.msra.mxu0 0
        %1062 = vmatprep.subr.bf16.mxu0 0
        %1063 = vmatpush2.bf16.msra.mxu0 0
        %1064 = vmatprep.subr.bf16.mxu0 0
        %1065 = vmatpush2.bf16.msra.mxu0 0
        %1066 = vmatprep.subr.bf16.mxu0 0
        %1067 = vmatpush2.bf16.msra.mxu0 0
        %1068 = vmatprep.subr.bf16.mxu0 0
        %1069 = vmatpush2.bf16.msra.mxu0 0
        %1070 = vmatprep.subr.bf16.mxu0 0
        %1071 = vmatpush2.bf16.msra.mxu0 0
        %1072 = vmatprep.mubr.bf16.mxu0 0
        %1073 = vmatmul.mubr.bf16.gmra.mxu0 %v1038
        %v1074 = vpop.f32.mrf.mxu0
        %v1075 = vadd.f32 0.0, %v1074
        %v1076 = vpop.f32.mrf.mxu0
        %v1077 = vpop.f32.mrf.mxu0
        %v1078 = vpop.f32.mrf.mxu0
        %1079 = vdwg.mxu0
        %v1080 = vadd.f32 %v459, %v1075
        %v1081 = vlaneseq
        %v1082 = vshrl.u32 %v1081, 7
        %v1083 = vsub.s32 3, %v1082
        %v1084 = vrot.slane %v458, %v1083
        %v1085 = vadd.f32 %v1080, %v1084
        %v1086 = vsel %vm460, %v1085, 0.0
        %1087 = vadd.xlane.f32.xlu0 %v1086
        %v1088 = vpop.xlane.xlu0 %1087
        %v1089 = vmul.f32 %v1088, %v464
        %v1090 = vsub.f32 %v1085, %v1089
        %v1091 = vmul.f32 %v1090, %v1090
        %v1092 = vsel %vm460, %v1091, 0.0
        %1093 = vadd.xlane.f32.xlu0 %v1092
        %v1094 = vpop.xlane.xlu0 %1093
        %v1095 = vmul.f32 %v1094, %v471
        %v1096 = vrsqrt.pop %v1095
        %v1097 = vmul.f32 %v1095, %v1096
        %vm1098 = vcmp.eq.f32.partialorder %v1095, inf
        %v1099 = vsel %vm1098, %v1095, %v1097
        %vm1100 = vcmp.eq.f32.partialorder %v1095, 0.0
        %v1101 = vand.u32 %v1095, 2147483648
        %v1102 = vsel %vm1100, %v1101, %v1099
        %v1103 = vlaneseq
        %v1104 = vshrl.u32 %v1103, 7
        %v1105 = vsub.s32 4, %v1104
        %v1106 = vrot.slane %v458, %v1105
        %v1107 = vmul.f32 %v1106, %v1090
        %v1108 = vadd.f32 %v1102, 1e-06
        %v1109 = vrcp.pop %v1108
        %v1110 = vmul.f32 %v1107, %v1109
        %v1111 = vlaneseq
        %v1112 = vshrl.u32 %v1111, 7
        %v1113 = vsub.s32 5, %v1112
        %v1114 = vrot.slane %v458, %v1113
        %v1115 = vadd.f32 %v1110, %v1114
        %v1116 = vpack.c.bf16 %v1115, %v1115
        %v1117 = vld [vmem:[%s444] sm:$0xf]
        %v1118 = vld [vmem:[%s444 + $0x4] sm:$0xf]
        %v1119 = vld [vmem:[%s444 + $0x8] sm:$0xf]
        %v1120 = vld [vmem:[%s444 + $0xc] sm:$0xf]
        %v1121 = vlaneseq
        %v1122 = vshrl.u32 %v1121, 7
        %v1123 = vsub.s32 6, %v1122
        %v1124 = vrot.slane %v458, %v1123
        %v1129 = vunpack.c.l.b16 %v1117
        %v1130 = vunpack.c.l.b16 %v1118
        %v1131 = vunpack.c.l.b16 %v1119
        %v1132 = vunpack.c.l.b16 %v1120
        %v1133 = vpack.c.b16 %v1130, %v1129
        %v1134 = vpack.c.b16 %v1132, %v1131
        %v1138 = vsel %vm460, %v1116, 0
        %1140 = vmatprep.subr.bf16.mxu0 0
        %1141 = vmatpush1.bf16.msra.mxu0 0
        %1142 = vmatprep.subr.bf16.mxu0 0
        %1143 = vmatpush1.bf16.msra.mxu0 0
        %1144 = vmatprep.subr.bf16.mxu0 0
        %1145 = vmatpush1.bf16.msra.mxu0 0
        %1146 = vmatprep.subr.bf16.mxu0 0
        %1147 = vmatpush1.bf16.msra.mxu0 0
        %1148 = vmatprep.subr.bf16.mxu0 0
        %1149 = vmatpush1.bf16.msra.mxu0 0
        %1150 = vmatprep.subr.bf16.mxu0 0
        %1151 = vmatpush1.bf16.msra.mxu0 0
        %1152 = vmatprep.subr.bf16.mxu0 0
        %1153 = vmatpush1.bf16.msra.mxu0 %v1134
        %1154 = vmatprep.subr.bf16.mxu0 0
        %1155 = vmatpush1.bf16.msra.mxu0 %v1133
        %1156 = vmatprep.subr.bf16.mxu0 0
        %1157 = vmatpush2.bf16.msra.mxu0 0
        %1158 = vmatprep.subr.bf16.mxu0 0
        %1159 = vmatpush2.bf16.msra.mxu0 0
        %1160 = vmatprep.subr.bf16.mxu0 0
        %1161 = vmatpush2.bf16.msra.mxu0 0
        %1162 = vmatprep.subr.bf16.mxu0 0
        %1163 = vmatpush2.bf16.msra.mxu0 0
        %1164 = vmatprep.subr.bf16.mxu0 0
        %1165 = vmatpush2.bf16.msra.mxu0 0
        %1166 = vmatprep.subr.bf16.mxu0 0
        %1167 = vmatpush2.bf16.msra.mxu0 0
        %1168 = vmatprep.subr.bf16.mxu0 0
        %1169 = vmatpush2.bf16.msra.mxu0 0
        %1170 = vmatprep.subr.bf16.mxu0 0
        %1171 = vmatpush2.bf16.msra.mxu0 0
        %1172 = vmatprep.mubr.bf16.mxu0 0
        %1173 = vmatmul.mubr.bf16.gmra.mxu0 %v1138
        %v1174 = vpop.f32.mrf.mxu0
        %v1175 = vadd.f32 %v1124, %v1174
        %v1176 = vpop.f32.mrf.mxu0
        %v1177 = vpop.f32.mrf.mxu0
        %v1178 = vpop.f32.mrf.mxu0
        %1179 = vdwg.mxu0
        %v1180 = vmax.f32 %v1175, 0.0
        %v1181 = vpack.c.bf16 %v1180, %v1180
        %v1182 = vld [vmem:[%s449] sm:$0xf]
        %v1183 = vld [vmem:[%s449 + $0x4] sm:$0xf]
        %v1184 = vld [vmem:[%s449 + $0x8] sm:$0xf]
        %v1185 = vld [vmem:[%s449 + $0xc] sm:$0xf]
        %v1186 = vld [vmem:[%s449 + $0x10] sm:$0xf]
        %v1187 = vld [vmem:[%s449 + $0x14] sm:$0xf]
        %v1188 = vld [vmem:[%s449 + $0x18] sm:$0xf]
        %v1189 = vld [vmem:[%s449 + $0x1c] sm:$0xf]
        %v1198 = vunpack.c.l.b16 %v1182
        %v1199 = vunpack.c.l.b16 %v1183
        %v1200 = vunpack.c.l.b16 %v1184
        %v1201 = vunpack.c.l.b16 %v1185
        %v1202 = vunpack.c.l.b16 %v1186
        %v1203 = vunpack.c.l.b16 %v1187
        %v1204 = vunpack.c.l.b16 %v1188
        %v1205 = vunpack.c.l.b16 %v1189
        %v1206 = vpack.c.b16 %v1199, %v1198
        %v1207 = vpack.c.b16 %v1201, %v1200
        %v1208 = vpack.c.b16 %v1203, %v1202
        %v1209 = vpack.c.b16 %v1205, %v1204
        %vm1214 = vcmask 523264
        %v1216 = vsel %vm1214, %v1181, 0
        %1218 = vmatprep.subr.bf16.mxu0 0
        %1219 = vmatpush1.bf16.msra.mxu0 0
        %1220 = vmatprep.subr.bf16.mxu0 0
        %1221 = vmatpush1.bf16.msra.mxu0 0
        %1222 = vmatprep.subr.bf16.mxu0 0
        %1223 = vmatpush1.bf16.msra.mxu0 0
        %1224 = vmatprep.subr.bf16.mxu0 0
        %1225 = vmatpush1.bf16.msra.mxu0 0
        %1226 = vmatprep.subr.bf16.mxu0 0
        %1227 = vmatpush1.bf16.msra.mxu0 %v1209
        %1228 = vmatprep.subr.bf16.mxu0 0
        %1229 = vmatpush1.bf16.msra.mxu0 %v1208
        %1230 = vmatprep.subr.bf16.mxu0 0
        %1231 = vmatpush1.bf16.msra.mxu0 %v1207
        %1232 = vmatprep.subr.bf16.mxu0 0
        %1233 = vmatpush1.bf16.msra.mxu0 %v1206
        %1234 = vmatprep.subr.bf16.mxu0 0
        %1235 = vmatpush2.bf16.msra.mxu0 0
        %1236 = vmatprep.subr.bf16.mxu0 0
        %1237 = vmatpush2.bf16.msra.mxu0 0
        %1238 = vmatprep.subr.bf16.mxu0 0
        %1239 = vmatpush2.bf16.msra.mxu0 0
        %1240 = vmatprep.subr.bf16.mxu0 0
        %1241 = vmatpush2.bf16.msra.mxu0 0
        %1242 = vmatprep.subr.bf16.mxu0 0
        %1243 = vmatpush2.bf16.msra.mxu0 0
        %1244 = vmatprep.subr.bf16.mxu0 0
        %1245 = vmatpush2.bf16.msra.mxu0 0
        %1246 = vmatprep.subr.bf16.mxu0 0
        %1247 = vmatpush2.bf16.msra.mxu0 0
        %1248 = vmatprep.subr.bf16.mxu0 0
        %1249 = vmatpush2.bf16.msra.mxu0 0
        %1250 = vmatprep.mubr.bf16.mxu0 0
        %1251 = vmatmul.mubr.bf16.gmra.mxu0 %v1216
        %v1252 = vpop.f32.mrf.mxu0
        %v1253 = vadd.f32 0.0, %v1252
        %v1254 = vpop.f32.mrf.mxu0
        %v1255 = vpop.f32.mrf.mxu0
        %v1256 = vpop.f32.mrf.mxu0
        %1257 = vdwg.mxu0
        %v1258 = vadd.f32 %v1085, %v1253
        %v1259 = vlaneseq
        %v1260 = vshrl.u32 %v1259, 7
        %v1261 = vsub.s32 7, %v1260
        %v1262 = vrot.slane %v458, %v1261
        %v1263 = vadd.f32 %v1258, %v1262
        %1264 = vst.msk [vmem:[%s429] sm:$0xff] %vm460, %v1263
        %p1265 = scmp.eq.s32.totalorder %s33, 1
        // Predicated region
        $region65: #{attention_block_forward.1} parent=51 // pred_check
          %p1266 = pneg %p1265
        $region66: #{attention_block_forward.1} parent=51 // pred_check_branch
          %1268 = sbr.rel (%p1266) target = $region68
        $region67: #{attention_block_forward.1} parent=51 // pred_region
          %v1269 = vld [vmem:[%s429] sm:$0xff]
          %v1270 = vld [vmem:[%s6] sm:$0x1]
          %v1271 = vld [vmem:[%s7] sm:$0x1]
          %v1272 = vsel %vm460, %v1269, 0.0
          %1273 = vadd.xlane.f32.xlu0 %v1272
          %v1274 = vpop.xlane.xlu0 %1273
          %v1275 = vmul.f32 %v1274, %v464
          %v1276 = vsub.f32 %v1269, %v1275
          %v1277 = vmul.f32 %v1276, %v1276
          %v1278 = vsel %vm460, %v1277, 0.0
          %1279 = vadd.xlane.f32.xlu0 %v1278
          %v1280 = vpop.xlane.xlu0 %1279
          %v1281 = vmul.f32 %v1280, %v471
          %v1282 = vrsqrt.pop %v1281
          %v1283 = vmul.f32 %v1281, %v1282
          %vm1284 = vcmp.eq.f32.partialorder %v1281, inf
          %v1285 = vsel %vm1284, %v1281, %v1283
          %vm1286 = vcmp.eq.f32.partialorder %v1281, 0.0
          %v1287 = vand.u32 %v1281, 2147483648
          %v1288 = vsel %vm1286, %v1287, %v1285
          %v1290 = vlaneseq
          %v1291 = vshrl.u32 %v1290, 7
          %v1292 = vsub.s32 0, %v1291
          %v1293 = vrot.slane %v1270, %v1292
          %v1295 = vmul.f32 %v1293, %v1276
          %v1296 = vadd.f32 %v1288, 1e-06
          %v1297 = vrcp.pop %v1296
          %v1298 = vmul.f32 %v1295, %v1297
          %v1300 = vlaneseq
          %v1301 = vshrl.u32 %v1300, 7
          %v1302 = vsub.s32 0, %v1301
          %v1303 = vrot.slane %v1271, %v1302
          %v1305 = vadd.f32 %v1298, %v1303
          %1306 = vst.msk [vmem:[%s429] sm:$0xff] %vm460, %v1305
        $region68: #{attention_block_forward.1} parent=51 // pred_fallthru
          _
        %s1307 = sand.u32 %s246, 1
        %s1308 = scalar_lea.sflag [#allocation4], %s1307
        %s1309 = sand.u32 %s246, 1
        %s1310 = smul.addr %s1309, 8
        %s1311 = scalar_lea.vmem [#allocation7], %s1310
        // Predicated region
        $region69: #{attention_block_forward.1} parent=51 // pred_check
          %p1312 = pneg %p256
        $region70: #{attention_block_forward.1} parent=51 // pred_check_branch
          %1314 = sbr.rel (%p1312) target = $region72
        $region71: #{attention_block_forward.1} parent=51 // pred_region
          %s1316 = ssub.s32 128, 128
          %1317 = vsyncadd %s1308, %s1316
          %s1318 = smul.addr %s32, 128
          %s1319 = scalar_lea.hbm %s8, %s1318
          %s1321 = sshll.u32 %s1311, 4
          %s1322 = int_to_ptr.vmem [resolvable:$true] %s1321
          %1324 = dma.vmem_to_hbm [thread:$0]  %s1322, 128, %s1319, %s1308
        $region72: #{attention_block_forward.1} parent=51 // pred_fallthru
          _
      $region52: #{attention_block_forward.1} parent=5 // pred_fallthru
        _
      %p1325 = scmp.le.s32.totalorder 2, %s23
      // Predicated region
      $region73: #{attention_block_forward.1} parent=5 // pred_check
        %p1326 = pneg %p1325
      $region74: #{attention_block_forward.1} parent=5 // pred_check_branch
        %1328 = sbr.rel (%p1326) target = $region76
      $region75: #{attention_block_forward.1} parent=5 // pred_region
        %s1329 = ssub.s32 %s23, 2
        // Predicated region
        $region77: #{attention_block_forward.1} parent=75 // pred_check
          %p1330 = pneg %p262
        $region78: #{attention_block_forward.1} parent=75 // pred_check_branch
          %1332 = sbr.rel (%p1330) target = $region80
        $region79: #{attention_block_forward.1} parent=75 // pred_region
          %s1333 = sand.u32 %s247, 1
          %s1334 = scalar_lea.sflag [#allocation4], %s1333
          %s1335 = sand.u32 %s247, 1
          %s1336 = smul.addr %s1335, 8
          %s1337 = scalar_lea.vmem [#allocation7], %s1336
          %1338 = dma.done %s1334, 128
        $region80: #{attention_block_forward.1} parent=75 // pred_fallthru
          _
      $region76: #{attention_block_forward.1} parent=5 // pred_fallthru
        _
    $region6: #{attention_block_forward.1} parent=1 // loop_footer
      %s27 = sadd.s32 1, %s23
    $region7: #{attention_block_forward.1} parent=1 // loop_footer_branch
      %22 = sbr.rel target = $region3
    $region8: #{attention_block_forward.1} parent=1 // loop_exit
      _
    %1339 = vsyncpa [#allocation3], 1
    %s1340 = scalar_lea.sflag [#allocation3], 1
    %1341 = vsyncpa %s1340, 1
    %1342 = vsyncpa [#allocation6], 1
    %s1343 = scalar_lea.sflag [#allocation6], 1
    %1344 = vsyncpa %s1343, 1
    %1345 = vsyncpa [#allocation4], 1
    %s1346 = scalar_lea.sflag [#allocation4], 1
    %1347 = vsyncpa %s1346, 1

</llo_original>
